<compile_context>
chip_gen: v5e
topology: v5e:2x2
jax: 0.10.0
libtpu: 0.0.40
codegen_flags: <defaults>
</compile_context>

<pallas_src>
import jax
import jax.numpy as jnp
from jax.experimental import pallas as pl
from jax.experimental.pallas import tpu as pltpu


# ----------------------------- helpers ------------------------------------ #

_TILE_M_MAX = 512            # 256-512 row tiles: ~HBM-roofline territory
_FC_HIDDEN_PAD = 128         # keep FC intermediates lane-dense (multiple of 128)
_VMEM_LIMIT = 32 * 1024 * 1024


def _round_up(n, m):
    return ((n + m - 1) // m) * m


def _m_tiling(m):
    """Return (padded_M, tile_M): single tile if small, else 512-row tiles."""
    mp = _round_up(m, 8)
    if mp <= _TILE_M_MAX:
        return mp, mp
    return _round_up(m, _TILE_M_MAX), _TILE_M_MAX


def _mosaic_params():
    cls = getattr(pltpu, "CompilerParams", None) or getattr(pltpu, "TPUCompilerParams", None)
    if cls is None:
        return None
    return cls(dimension_semantics=("parallel",), vmem_limit_bytes=_VMEM_LIMIT)


# ----------------------------- Pallas kernels ------------------------------ #

def _conv_relu_pool_kernel(p00_ref, p01_ref, p10_ref, p11_ref, w_ref, b_ref, o_ref):
    """Fused conv (as matmul) + 2x2 maxpool + bias + ReLU.

    Each p_rc tile holds the im2col rows of one pool-window corner.  Since
    ReLU is monotone, maxpool(ReLU(conv)) == ReLU(max_rc(P_rc @ W) + b).
    bf16 operands on the MXU, fp32 accumulator / epilogue.
    """
    w = w_ref[...]
    acc = jnp.dot(p00_ref[...], w, preferred_element_type=jnp.float32)
    acc = jnp.maximum(acc, jnp.dot(p01_ref[...], w, preferred_element_type=jnp.float32))
    acc = jnp.maximum(acc, jnp.dot(p10_ref[...], w, preferred_element_type=jnp.float32))
    acc = jnp.maximum(acc, jnp.dot(p11_ref[...], w, preferred_element_type=jnp.float32))
    o_ref[...] = jnp.maximum(acc + b_ref[...], 0.0)


def _fc_stack_kernel(x_ref, w1_ref, b1_ref, w2_ref, b2_ref, w3_ref, b3_ref, o_ref):
    """fc1+ReLU -> fc2+ReLU -> fc3, all intermediates kept on-chip (fp32)."""
    h = jnp.dot(x_ref[...], w1_ref[...], preferred_element_type=jnp.float32)
    h = jnp.maximum(h + b1_ref[...], 0.0)
    h = jnp.dot(h.astype(jnp.bfloat16), w2_ref[...], preferred_element_type=jnp.float32)
    h = jnp.maximum(h + b2_ref[...], 0.0)
    h = jnp.dot(h.astype(jnp.bfloat16), w3_ref[...], preferred_element_type=jnp.float32)
    o_ref[...] = h + b3_ref[...]


# ----------------------------- Pallas wrappers ----------------------------- #

def conv_relu_pool(x, w_mat, b_row, kh=5, kw=5):
    """Fused Conv2d(valid, stride 1) + bias + ReLU + MaxPool2d(2, 2).

    x:     [B, H, W, Cin] NHWC (fp32 or bf16)
    w_mat: [Kp, Cout] bf16, rows ordered (kh, kw, cin), zero-padded to Kp
    b_row: [1, Cout] fp32
    returns [B, (H-kh+1)//2, (W-kw+1)//2, Cout] fp32
    """
    B, H, W, Cin = x.shape
    Kp, Cout = w_mat.shape
    Ho, Wo = H - kh + 1, W - kw + 1
    Hp, Wp = Ho // 2, Wo // 2
    M = B * Hp * Wp
    K = kh * kw * Cin

    xb = x.astype(jnp.bfloat16)
    Mp, TM = _m_tiling(M)

    # Pool-corner im2col (plain-JAX glue, one fused materialization per corner,
    # K already padded so there is no second pad copy in HBM).
    corners = []
    for r in range(2):
        for c in range(2):
            taps = [xb[:, r + i: r + i + 2 * Hp: 2, c + j: c + j + 2 * Wp: 2, :]
                    for i in range(kh) for j in range(kw)]
            p = jnp.stack(taps, axis=3).reshape(M, K)
            corners.append(jnp.pad(p, ((0, Mp - M), (0, Kp - K))))

    out = pl.pallas_call(
        _conv_relu_pool_kernel,
        out_shape=jax.ShapeDtypeStruct((Mp, Cout), jnp.float32),
        grid=(Mp // TM,),
        in_specs=[pl.BlockSpec((TM, Kp), lambda i: (i, 0)) for _ in range(4)]
                + [pl.BlockSpec((Kp, Cout), lambda i: (0, 0)),
                   pl.BlockSpec((1, Cout), lambda i: (0, 0))],
        out_specs=pl.BlockSpec((TM, Cout), lambda i: (i, 0)),
        compiler_params=_mosaic_params(),
    )(*corners, w_mat, b_row)
    return out[:M].reshape(B, Hp, Wp, Cout)


def fc_stack(x, w1, b1, w2, b2, w3, b3):
    """Single-call fused FC head.  x: [B, Kin] fp32 -> logits [B, 10] fp32."""
    B, Kin = x.shape
    Nout = w3.shape[1]
    Mp, TM = _m_tiling(B)
    xb = jnp.pad(x.astype(jnp.bfloat16), ((0, Mp - B), (0, 0)))

    out = pl.pallas_call(
        _fc_stack_kernel,
        out_shape=jax.ShapeDtypeStruct((Mp, Nout), jnp.float32),
        grid=(Mp // TM,),
        in_specs=[pl.BlockSpec((TM, Kin), lambda i: (i, 0)),
                  pl.BlockSpec(w1.shape, lambda i: (0, 0)),
                  pl.BlockSpec(b1.shape, lambda i: (0, 0)),
                  pl.BlockSpec(w2.shape, lambda i: (0, 0)),
                  pl.BlockSpec(b2.shape, lambda i: (0, 0)),
                  pl.BlockSpec(w3.shape, lambda i: (0, 0)),
                  pl.BlockSpec(b3.shape, lambda i: (0, 0))],
        out_specs=pl.BlockSpec((TM, Nout), lambda i: (i, 0)),
        compiler_params=_mosaic_params(),
    )(xb, w1, b1, w2, b2, w3, b3)
    return out[:B]


# ----------------------------- params -------------------------------------- #

def init_params(key):
    """PyTorch-default U(-1/sqrt(fan_in), +1/sqrt(fan_in)) init, PyTorch layouts."""
    ks = jax.random.split(key, 10)

    def u(k, shape, fan_in):
        bound = 1.0 / float(fan_in) ** 0.5
        return jax.random.uniform(k, shape, jnp.float32, -bound, bound)

    return {
        'conv1_w': u(ks[0], (6, 1, 5, 5), 1 * 5 * 5),
        'conv1_b': u(ks[1], (6,), 1 * 5 * 5),
        'conv2_w': u(ks[2], (16, 6, 5, 5), 6 * 5 * 5),
        'conv2_b': u(ks[3], (16,), 6 * 5 * 5),
        'fc1_w':   u(ks[4], (120, 16 * 4 * 4), 16 * 4 * 4),   # PyTorch [out, in]
        'fc1_b':   u(ks[5], (120,), 16 * 4 * 4),
        'fc2_w':   u(ks[6], (84, 120), 120),
        'fc2_b':   u(ks[7], (84,), 120),
        'fc3_w':   u(ks[8], (10, 84), 84),
        'fc3_b':   u(ks[9], (10,), 84),
    }


def pack_params(params):
    """One-time layout/dtype packing (transposes, K/N zero-padding, bf16 cast)."""

    def conv_pack(w, b, cin_pad, cout_pad, k_pad):
        Cout, Cin, kh, kw = w.shape
        wm = jnp.transpose(w, (2, 3, 1, 0))                              # [kh,kw,Cin,Cout]
        wm = jnp.pad(wm, ((0, 0), (0, 0), (0, cin_pad - Cin), (0, cout_pad - Cout)))
        wm = wm.reshape(kh * kw * cin_pad, cout_pad)
        wm = jnp.pad(wm, ((0, k_pad - wm.shape[0]), (0, 0))).astype(jnp.bfloat16)
        bm = jnp.pad(b, (0, cout_pad - Cout)).reshape(1, cout_pad).astype(jnp.float32)
        return wm, bm

    # conv1: Cin=1 -> K=25 padded to 128; Cout padded 6->8 (zero channels are
    # killed again by conv2's zero-padded cin rows).  conv2: Cin=8 -> K=200
    # padded to 256 (full 256-deep MXU cadence on v6e/v7x).
    c1w, c1b = conv_pack(params['conv1_w'], params['conv1_b'], cin_pad=1, cout_pad=8, k_pad=128)
    c2w, c2b = conv_pack(params['conv2_w'], params['conv2_b'], cin_pad=8, cout_pad=16, k_pad=256)

    # fc1: fold PyTorch's NCHW Flatten ordering (c,h,w) into the weight rows so
    # the NHWC pooled activation can be flattened directly (no runtime transpose).
    w1 = params['fc1_w'].reshape(120, 16, 4, 4)                          # [out, c, h, w]
    w1 = jnp.transpose(w1, (2, 3, 1, 0)).reshape(4 * 4 * 16, 120)        # rows = (h, w, c)
    w1 = jnp.pad(w1, ((0, 0), (0, _FC_HIDDEN_PAD - 120))).astype(jnp.bfloat16)
    b1 = jnp.pad(params['fc1_b'], (0, _FC_HIDDEN_PAD - 120)).reshape(1, -1).astype(jnp.float32)

    w2 = jnp.pad(params['fc2_w'].T,
                 ((0, _FC_HIDDEN_PAD - 120), (0, _FC_HIDDEN_PAD - 84))).astype(jnp.bfloat16)
    b2 = jnp.pad(params['fc2_b'], (0, _FC_HIDDEN_PAD - 84)).reshape(1, -1).astype(jnp.float32)

    w3 = jnp.pad(params['fc3_w'].T, ((0, _FC_HIDDEN_PAD - 84), (0, 0))).astype(jnp.bfloat16)
    b3 = params['fc3_b'].reshape(1, -1).astype(jnp.float32)

    return {'conv1_w': c1w, 'conv1_b': c1b, 'conv2_w': c2w, 'conv2_b': c2b,
            'fc1_w': w1, 'fc1_b': b1, 'fc2_w': w2, 'fc2_b': b2,
            'fc3_w': w3, 'fc3_b': b3}


# ----------------------------- model --------------------------------------- #

def convnet_forward(x_nchw, p):
    """x: [B, 1, 28, 28] NCHW -> logits [B, 10]."""
    x = jnp.transpose(x_nchw, (0, 2, 3, 1))                     # NCHW -> NHWC
    x = conv_relu_pool(x, p['conv1_w'], p['conv1_b'])           # [B, 12, 12, 8]
    x = conv_relu_pool(x, p['conv2_w'], p['conv2_b'])           # [B, 4, 4, 16]
    B = x.shape[0]
    x = x.reshape(B, -1)            # NHWC flatten; fc1 rows pre-permuted to match
    return fc_stack(x, p['fc1_w'], p['fc1_b'], p['fc2_w'], p['fc2_b'],
                    p['fc3_w'], p['fc3_b'])


# ----------------------------- main ----------------------------------------- #

if __name__ == "__main__":
    key = jax.random.PRNGKey(0)
    k_param, k_x = jax.random.split(key)
    params = pack_params(init_params(k_param))
    # 28x28 input is dictated by the module (16*4*4 flatten after two valid
    # 5x5 convs and two 2x2 pools).
    x = jax.random.normal(k_x, (2, 1, 28, 28), dtype=jnp.float32)

    out = jax.block_until_ready(jax.jit(convnet_forward)(x, params))
    assert out.shape == (2, 10), out.shape
    assert out.dtype == jnp.float32
    print("KERNEL_OK")
</pallas_src>

<mosaic_0001>
module attributes {stable_mosaic.version = 11 : i64} {
  func.func @_conv_relu_pool_kernel(%arg0: i32, %arg1: memref<288x128xbf16, #tpu.memory_space<vmem>>, %arg2: memref<288x128xbf16, #tpu.memory_space<vmem>>, %arg3: memref<288x128xbf16, #tpu.memory_space<vmem>>, %arg4: memref<288x128xbf16, #tpu.memory_space<vmem>>, %arg5: memref<128x8xbf16, #tpu.memory_space<vmem>>, %arg6: memref<1x8xf32, #tpu.memory_space<vmem>>, %arg7: memref<288x8xf32, #tpu.memory_space<vmem>>) attributes {dimension_semantics = [#tpu.dimension_semantics<parallel>], iteration_bounds = array<i64: 1>, scalar_prefetch = 0 : i64, scratch_operands = 0 : i64, tpu.core_type = #tpu.core_type<tc>, window_params = [{transform_indices = @transform_0, window_bounds = array<i64: 288, 128>}, {transform_indices = @transform_1, window_bounds = array<i64: 288, 128>}, {transform_indices = @transform_2, window_bounds = array<i64: 288, 128>}, {transform_indices = @transform_3, window_bounds = array<i64: 288, 128>}, {pipeline_mode = #tpu.pipeline_mode<synchronous>, transform_indices = @transform_4, window_bounds = array<i64: 128, 8>}, {pipeline_mode = #tpu.pipeline_mode<synchronous>, transform_indices = @transform_5, window_bounds = array<i64: 1, 8>}, {transform_indices = @transform_6, window_bounds = array<i64: 288, 8>}]} {
    %c0 = arith.constant 0 : index
    %c0_0 = arith.constant 0 : index
    %0 = vector.load %arg5[%c0, %c0_0] : memref<128x8xbf16, #tpu.memory_space<vmem>>, vector<128x8xbf16>
    %c0_1 = arith.constant 0 : index
    %c0_2 = arith.constant 0 : index
    %1 = vector.load %arg1[%c0_1, %c0_2] : memref<288x128xbf16, #tpu.memory_space<vmem>>, vector<288x128xbf16>
    %cst = arith.constant dense<0.000000e+00> : vector<288x8xf32>
    %2 = tpu.matmul %1, %0, %cst {dimension_numbers = #tpu.dot_dimension_numbers<[1], [0], [0], [1], [0, 0, 1, 1], [], []>} : vector<288x128xbf16>, vector<128x8xbf16>, vector<288x8xf32> -> vector<288x8xf32>
    %c0_3 = arith.constant 0 : index
    %c0_4 = arith.constant 0 : index
    %3 = vector.load %arg2[%c0_3, %c0_4] : memref<288x128xbf16, #tpu.memory_space<vmem>>, vector<288x128xbf16>
    %cst_5 = arith.constant dense<0.000000e+00> : vector<288x8xf32>
    %4 = tpu.matmul %3, %0, %cst_5 {dimension_numbers = #tpu.dot_dimension_numbers<[1], [0], [0], [1], [0, 0, 1, 1], [], []>} : vector<288x128xbf16>, vector<128x8xbf16>, vector<288x8xf32> -> vector<288x8xf32>
    %5 = arith.maximumf %2, %4 : vector<288x8xf32>
    %c0_6 = arith.constant 0 : index
    %c0_7 = arith.constant 0 : index
    %6 = vector.load %arg3[%c0_6, %c0_7] : memref<288x128xbf16, #tpu.memory_space<vmem>>, vector<288x128xbf16>
    %cst_8 = arith.constant dense<0.000000e+00> : vector<288x8xf32>
    %7 = tpu.matmul %6, %0, %cst_8 {dimension_numbers = #tpu.dot_dimension_numbers<[1], [0], [0], [1], [0, 0, 1, 1], [], []>} : vector<288x128xbf16>, vector<128x8xbf16>, vector<288x8xf32> -> vector<288x8xf32>
    %8 = arith.maximumf %5, %7 : vector<288x8xf32>
    %c0_9 = arith.constant 0 : index
    %c0_10 = arith.constant 0 : index
    %9 = vector.load %arg4[%c0_9, %c0_10] : memref<288x128xbf16, #tpu.memory_space<vmem>>, vector<288x128xbf16>
    %cst_11 = arith.constant dense<0.000000e+00> : vector<288x8xf32>
    %10 = tpu.matmul %9, %0, %cst_11 {dimension_numbers = #tpu.dot_dimension_numbers<[1], [0], [0], [1], [0, 0, 1, 1], [], []>} : vector<288x128xbf16>, vector<128x8xbf16>, vector<288x8xf32> -> vector<288x8xf32>
    %11 = arith.maximumf %8, %10 : vector<288x8xf32>
    %c0_12 = arith.constant 0 : index
    %c0_13 = arith.constant 0 : index
    %12 = vector.load %arg6[%c0_12, %c0_13] : memref<1x8xf32, #tpu.memory_space<vmem>>, vector<1x8xf32>
    %13 = vector.broadcast %12 : vector<1x8xf32> to vector<288x8xf32>
    %14 = arith.addf %11, %13 : vector<288x8xf32>
    %cst_14 = arith.constant 0.000000e+00 : f32
    %15 = vector.broadcast %cst_14 : f32 to vector<288x8xf32>
    %16 = arith.maximumf %14, %15 : vector<288x8xf32>
    %c0_15 = arith.constant 0 : index
    %c0_16 = arith.constant 0 : index
    %17 = vector.load %arg7[%c0_15, %c0_16] : memref<288x8xf32, #tpu.memory_space<vmem>>, vector<288x8xf32>
    tpu.vector_store %arg7[%c0_15, %c0_16], %16 {strides = array<i32>} : memref<288x8xf32, #tpu.memory_space<vmem>>, vector<288x8xf32>,
    return
  }
  func.func @transform_0(%arg0: i32) -> (i32, i32) {
    %c0_i32 = arith.constant 0 : i32
    %c0_i32_0 = arith.constant 0 : i32
    return %arg0, %c0_i32 : i32, i32
  }
  func.func @transform_1(%arg0: i32) -> (i32, i32) {
    %c0_i32 = arith.constant 0 : i32
    %c0_i32_0 = arith.constant 0 : i32
    return %arg0, %c0_i32 : i32, i32
  }
  func.func @transform_2(%arg0: i32) -> (i32, i32) {
    %c0_i32 = arith.constant 0 : i32
    %c0_i32_0 = arith.constant 0 : i32
    return %arg0, %c0_i32 : i32, i32
  }
  func.func @transform_3(%arg0: i32) -> (i32, i32) {
    %c0_i32 = arith.constant 0 : i32
    %c0_i32_0 = arith.constant 0 : i32
    return %arg0, %c0_i32 : i32, i32
  }
  func.func @transform_4(%arg0: i32) -> (i32, i32) {
    %c0_i32 = arith.constant 0 : i32
    %c0_i32_0 = arith.constant 0 : i32
    %c0_i32_1 = arith.constant 0 : i32
    return %c0_i32, %c0_i32_0 : i32, i32
  }
  func.func @transform_5(%arg0: i32) -> (i32, i32) {
    %c0_i32 = arith.constant 0 : i32
    %c0_i32_0 = arith.constant 0 : i32
    %c0_i32_1 = arith.constant 0 : i32
    return %c0_i32, %c0_i32_0 : i32, i32
  }
  func.func @transform_6(%arg0: i32) -> (i32, i32) {
    %c0_i32 = arith.constant 0 : i32
    %c0_i32_0 = arith.constant 0 : i32
    return %arg0, %c0_i32 : i32, i32
  }
}

module attributes {stable_mosaic.version = 11 : i64} {
  func.func @_fc_stack_kernel(%arg0: i32, %arg1: memref<8x256xbf16, #tpu.memory_space<vmem>>, %arg2: memref<256x128xbf16, #tpu.memory_space<vmem>>, %arg3: memref<1x128xf32, #tpu.memory_space<vmem>>, %arg4: memref<128x128xbf16, #tpu.memory_space<vmem>>, %arg5: memref<1x128xf32, #tpu.memory_space<vmem>>, %arg6: memref<128x10xbf16, #tpu.memory_space<vmem>>, %arg7: memref<1x10xf32, #tpu.memory_space<vmem>>, %arg8: memref<8x10xf32, #tpu.memory_space<vmem>>) attributes {dimension_semantics = [#tpu.dimension_semantics<parallel>], iteration_bounds = array<i64: 1>, scalar_prefetch = 0 : i64, scratch_operands = 0 : i64, tpu.core_type = #tpu.core_type<tc>, window_params = [{transform_indices = @transform_0, window_bounds = array<i64: 8, 256>}, {pipeline_mode = #tpu.pipeline_mode<synchronous>, transform_indices = @transform_1, window_bounds = array<i64: 256, 128>}, {pipeline_mode = #tpu.pipeline_mode<synchronous>, transform_indices = @transform_2, window_bounds = array<i64: 1, 128>}, {pipeline_mode = #tpu.pipeline_mode<synchronous>, transform_indices = @transform_3, window_bounds = array<i64: 128, 128>}, {pipeline_mode = #tpu.pipeline_mode<synchronous>, transform_indices = @transform_4, window_bounds = array<i64: 1, 128>}, {pipeline_mode = #tpu.pipeline_mode<synchronous>, transform_indices = @transform_5, window_bounds = array<i64: 128, 10>}, {pipeline_mode = #tpu.pipeline_mode<synchronous>, transform_indices = @transform_6, window_bounds = array<i64: 1, 10>}, {transform_indices = @transform_7, window_bounds = array<i64: 8, 10>}]} {
    %c0 = arith.constant 0 : index
    %c0_0 = arith.constant 0 : index
    %0 = vector.load %arg1[%c0, %c0_0] : memref<8x256xbf16, #tpu.memory_space<vmem>>, vector<8x256xbf16>
    %c0_1 = arith.constant 0 : index
    %c0_2 = arith.constant 0 : index
    %1 = vector.load %arg2[%c0_1, %c0_2] : memref<256x128xbf16, #tpu.memory_space<vmem>>, vector<256x128xbf16>
    %cst = arith.constant dense<0.000000e+00> : vector<8x128xf32>
    %2 = tpu.matmul %0, %1, %cst {dimension_numbers = #tpu.dot_dimension_numbers<[1], [0], [0], [1], [0, 0, 1, 1], [], []>} : vector<8x256xbf16>, vector<256x128xbf16>, vector<8x128xf32> -> vector<8x128xf32>
    %c0_3 = arith.constant 0 : index
    %c0_4 = arith.constant 0 : index
    %3 = vector.load %arg3[%c0_3, %c0_4] : memref<1x128xf32, #tpu.memory_space<vmem>>, vector<1x128xf32>
    %4 = vector.broadcast %3 : vector<1x128xf32> to vector<8x128xf32>
    %5 = arith.addf %2, %4 : vector<8x128xf32>
    %cst_5 = arith.constant 0.000000e+00 : f32
    %6 = vector.broadcast %cst_5 : f32 to vector<8x128xf32>
    %7 = arith.maximumf %5, %6 : vector<8x128xf32>
    %8 = arith.truncf %7 : vector<8x128xf32> to vector<8x128xbf16>
    %c0_6 = arith.constant 0 : index
    %c0_7 = arith.constant 0 : index
    %9 = vector.load %arg4[%c0_6, %c0_7] : memref<128x128xbf16, #tpu.memory_space<vmem>>, vector<128x128xbf16>
    %cst_8 = arith.constant dense<0.000000e+00> : vector<8x128xf32>
    %10 = tpu.matmul %8, %9, %cst_8 {dimension_numbers = #tpu.dot_dimension_numbers<[1], [0], [0], [1], [0, 0, 1, 1], [], []>} : vector<8x128xbf16>, vector<128x128xbf16>, vector<8x128xf32> -> vector<8x128xf32>
    %c0_9 = arith.constant 0 : index
    %c0_10 = arith.constant 0 : index
    %11 = vector.load %arg5[%c0_9, %c0_10] : memref<1x128xf32, #tpu.memory_space<vmem>>, vector<1x128xf32>
    %12 = vector.broadcast %11 : vector<1x128xf32> to vector<8x128xf32>
    %13 = arith.addf %10, %12 : vector<8x128xf32>
    %cst_11 = arith.constant 0.000000e+00 : f32
    %14 = vector.broadcast %cst_11 : f32 to vector<8x128xf32>
    %15 = arith.maximumf %13, %14 : vector<8x128xf32>
    %16 = arith.truncf %15 : vector<8x128xf32> to vector<8x128xbf16>
    %c0_12 = arith.constant 0 : index
    %c0_13 = arith.constant 0 : index
    %17 = vector.load %arg6[%c0_12, %c0_13] : memref<128x10xbf16, #tpu.memory_space<vmem>>, vector<128x10xbf16>
    %cst_14 = arith.constant dense<0.000000e+00> : vector<8x10xf32>
    %18 = tpu.matmul %16, %17, %cst_14 {dimension_numbers = #tpu.dot_dimension_numbers<[1], [0], [0], [1], [0, 0, 1, 1], [], []>} : vector<8x128xbf16>, vector<128x10xbf16>, vector<8x10xf32> -> vector<8x10xf32>
    %c0_15 = arith.constant 0 : index
    %c0_16 = arith.constant 0 : index
    %19 = vector.load %arg7[%c0_15, %c0_16] : memref<1x10xf32, #tpu.memory_space<vmem>>, vector<1x10xf32>
    %20 = vector.broadcast %19 : vector<1x10xf32> to vector<8x10xf32>
    %21 = arith.addf %18, %20 : vector<8x10xf32>
    %c0_17 = arith.constant 0 : index
    %c0_18 = arith.constant 0 : index
    %22 = vector.load %arg8[%c0_17, %c0_18] : memref<8x10xf32, #tpu.memory_space<vmem>>, vector<8x10xf32>
    tpu.vector_store %arg8[%c0_17, %c0_18], %21 {strides = array<i32>} : memref<8x10xf32, #tpu.memory_space<vmem>>, vector<8x10xf32>,
    return
  }
  func.func @transform_0(%arg0: i32) -> (i32, i32) {
    %c0_i32 = arith.constant 0 : i32
    %c0_i32_0 = arith.constant 0 : i32
    return %arg0, %c0_i32 : i32, i32
  }
  func.func @transform_1(%arg0: i32) -> (i32, i32) {
    %c0_i32 = arith.constant 0 : i32
    %c0_i32_0 = arith.constant 0 : i32
    %c0_i32_1 = arith.constant 0 : i32
    return %c0_i32, %c0_i32_0 : i32, i32
  }
  func.func @transform_2(%arg0: i32) -> (i32, i32) {
    %c0_i32 = arith.constant 0 : i32
    %c0_i32_0 = arith.constant 0 : i32
    %c0_i32_1 = arith.constant 0 : i32
    return %c0_i32, %c0_i32_0 : i32, i32
  }
  func.func @transform_3(%arg0: i32) -> (i32, i32) {
    %c0_i32 = arith.constant 0 : i32
    %c0_i32_0 = arith.constant 0 : i32
    %c0_i32_1 = arith.constant 0 : i32
    return %c0_i32, %c0_i32_0 : i32, i32
  }
  func.func @transform_4(%arg0: i32) -> (i32, i32) {
    %c0_i32 = arith.constant 0 : i32
    %c0_i32_0 = arith.constant 0 : i32
    %c0_i32_1 = arith.constant 0 : i32
    return %c0_i32, %c0_i32_0 : i32, i32
  }
  func.func @transform_5(%arg0: i32) -> (i32, i32) {
    %c0_i32 = arith.constant 0 : i32
    %c0_i32_0 = arith.constant 0 : i32
    %c0_i32_1 = arith.constant 0 : i32
    return %c0_i32, %c0_i32_0 : i32, i32
  }
  func.func @transform_6(%arg0: i32) -> (i32, i32) {
    %c0_i32 = arith.constant 0 : i32
    %c0_i32_0 = arith.constant 0 : i32
    %c0_i32_1 = arith.constant 0 : i32
    return %c0_i32, %c0_i32_0 : i32, i32
  }
  func.func @transform_7(%arg0: i32) -> (i32, i32) {
    %c0_i32 = arith.constant 0 : i32
    %c0_i32_0 = arith.constant 0 : i32
    return %arg0, %c0_i32 : i32, i32
  }
}

module attributes {stable_mosaic.version = 11 : i64} {
  func.func @_conv_relu_pool_kernel(%arg0: i32, %arg1: memref<32x256xbf16, #tpu.memory_space<vmem>>, %arg2: memref<32x256xbf16, #tpu.memory_space<vmem>>, %arg3: memref<32x256xbf16, #tpu.memory_space<vmem>>, %arg4: memref<32x256xbf16, #tpu.memory_space<vmem>>, %arg5: memref<256x16xbf16, #tpu.memory_space<vmem>>, %arg6: memref<1x16xf32, #tpu.memory_space<vmem>>, %arg7: memref<32x16xf32, #tpu.memory_space<vmem>>) attributes {dimension_semantics = [#tpu.dimension_semantics<parallel>], iteration_bounds = array<i64: 1>, scalar_prefetch = 0 : i64, scratch_operands = 0 : i64, tpu.core_type = #tpu.core_type<tc>, window_params = [{transform_indices = @transform_0, window_bounds = array<i64: 32, 256>}, {transform_indices = @transform_1, window_bounds = array<i64: 32, 256>}, {transform_indices = @transform_2, window_bounds = array<i64: 32, 256>}, {transform_indices = @transform_3, window_bounds = array<i64: 32, 256>}, {pipeline_mode = #tpu.pipeline_mode<synchronous>, transform_indices = @transform_4, window_bounds = array<i64: 256, 16>}, {pipeline_mode = #tpu.pipeline_mode<synchronous>, transform_indices = @transform_5, window_bounds = array<i64: 1, 16>}, {transform_indices = @transform_6, window_bounds = array<i64: 32, 16>}]} {
    %c0 = arith.constant 0 : index
    %c0_0 = arith.constant 0 : index
    %0 = vector.load %arg5[%c0, %c0_0] : memref<256x16xbf16, #tpu.memory_space<vmem>>, vector<256x16xbf16>
    %c0_1 = arith.constant 0 : index
    %c0_2 = arith.constant 0 : index
    %1 = vector.load %arg1[%c0_1, %c0_2] : memref<32x256xbf16, #tpu.memory_space<vmem>>, vector<32x256xbf16>
    %cst = arith.constant dense<0.000000e+00> : vector<32x16xf32>
    %2 = tpu.matmul %1, %0, %cst {dimension_numbers = #tpu.dot_dimension_numbers<[1], [0], [0], [1], [0, 0, 1, 1], [], []>} : vector<32x256xbf16>, vector<256x16xbf16>, vector<32x16xf32> -> vector<32x16xf32>
    %c0_3 = arith.constant 0 : index
    %c0_4 = arith.constant 0 : index
    %3 = vector.load %arg2[%c0_3, %c0_4] : memref<32x256xbf16, #tpu.memory_space<vmem>>, vector<32x256xbf16>
    %cst_5 = arith.constant dense<0.000000e+00> : vector<32x16xf32>
    %4 = tpu.matmul %3, %0, %cst_5 {dimension_numbers = #tpu.dot_dimension_numbers<[1], [0], [0], [1], [0, 0, 1, 1], [], []>} : vector<32x256xbf16>, vector<256x16xbf16>, vector<32x16xf32> -> vector<32x16xf32>
    %5 = arith.maximumf %2, %4 : vector<32x16xf32>
    %c0_6 = arith.constant 0 : index
    %c0_7 = arith.constant 0 : index
    %6 = vector.load %arg3[%c0_6, %c0_7] : memref<32x256xbf16, #tpu.memory_space<vmem>>, vector<32x256xbf16>
    %cst_8 = arith.constant dense<0.000000e+00> : vector<32x16xf32>
    %7 = tpu.matmul %6, %0, %cst_8 {dimension_numbers = #tpu.dot_dimension_numbers<[1], [0], [0], [1], [0, 0, 1, 1], [], []>} : vector<32x256xbf16>, vector<256x16xbf16>, vector<32x16xf32> -> vector<32x16xf32>
    %8 = arith.maximumf %5, %7 : vector<32x16xf32>
    %c0_9 = arith.constant 0 : index
    %c0_10 = arith.constant 0 : index
    %9 = vector.load %arg4[%c0_9, %c0_10] : memref<32x256xbf16, #tpu.memory_space<vmem>>, vector<32x256xbf16>
    %cst_11 = arith.constant dense<0.000000e+00> : vector<32x16xf32>
    %10 = tpu.matmul %9, %0, %cst_11 {dimension_numbers = #tpu.dot_dimension_numbers<[1], [0], [0], [1], [0, 0, 1, 1], [], []>} : vector<32x256xbf16>, vector<256x16xbf16>, vector<32x16xf32> -> vector<32x16xf32>
    %11 = arith.maximumf %8, %10 : vector<32x16xf32>
    %c0_12 = arith.constant 0 : index
    %c0_13 = arith.constant 0 : index
    %12 = vector.load %arg6[%c0_12, %c0_13] : memref<1x16xf32, #tpu.memory_space<vmem>>, vector<1x16xf32>
    %13 = vector.broadcast %12 : vector<1x16xf32> to vector<32x16xf32>
    %14 = arith.addf %11, %13 : vector<32x16xf32>
    %cst_14 = arith.constant 0.000000e+00 : f32
    %15 = vector.broadcast %cst_14 : f32 to vector<32x16xf32>
    %16 = arith.maximumf %14, %15 : vector<32x16xf32>
    %c0_15 = arith.constant 0 : index
    %c0_16 = arith.constant 0 : index
    %17 = vector.load %arg7[%c0_15, %c0_16] : memref<32x16xf32, #tpu.memory_space<vmem>>, vector<32x16xf32>
    tpu.vector_store %arg7[%c0_15, %c0_16], %16 {strides = array<i32>} : memref<32x16xf32, #tpu.memory_space<vmem>>, vector<32x16xf32>,
    return
  }
  func.func @transform_0(%arg0: i32) -> (i32, i32) {
    %c0_i32 = arith.constant 0 : i32
    %c0_i32_0 = arith.constant 0 : i32
    return %arg0, %c0_i32 : i32, i32
  }
  func.func @transform_1(%arg0: i32) -> (i32, i32) {
    %c0_i32 = arith.constant 0 : i32
    %c0_i32_0 = arith.constant 0 : i32
    return %arg0, %c0_i32 : i32, i32
  }
  func.func @transform_2(%arg0: i32) -> (i32, i32) {
    %c0_i32 = arith.constant 0 : i32
    %c0_i32_0 = arith.constant 0 : i32
    return %arg0, %c0_i32 : i32, i32
  }
  func.func @transform_3(%arg0: i32) -> (i32, i32) {
    %c0_i32 = arith.constant 0 : i32
    %c0_i32_0 = arith.constant 0 : i32
    return %arg0, %c0_i32 : i32, i32
  }
  func.func @transform_4(%arg0: i32) -> (i32, i32) {
    %c0_i32 = arith.constant 0 : i32
    %c0_i32_0 = arith.constant 0 : i32
    %c0_i32_1 = arith.constant 0 : i32
    return %c0_i32, %c0_i32_0 : i32, i32
  }
  func.func @transform_5(%arg0: i32) -> (i32, i32) {
    %c0_i32 = arith.constant 0 : i32
    %c0_i32_0 = arith.constant 0 : i32
    %c0_i32_1 = arith.constant 0 : i32
    return %c0_i32, %c0_i32_0 : i32, i32
  }
  func.func @transform_6(%arg0: i32) -> (i32, i32) {
    %c0_i32 = arith.constant 0 : i32
    %c0_i32_0 = arith.constant 0 : i32
    return %arg0, %c0_i32 : i32, i32
  }
}

</mosaic_0001>

<llo_original>
// kernel: convnet_forward.3
$region0: #{convnet_forward.3}
  #allocation0 [shape = 'u32[]', space=smem, size = 0x4, offset = 0x4, fixed_abs, tag = 'smem constant byte address 0x4 - core index']
  #allocation1 [shape = 'u32[72,128]{1,0:T(1,128)}', space=vmem, size = 0x9000, scoped, tag = 'internal scratch']
  %s0 = inlined_call_operand.vmem [shape: bf16[288,128], index: 0, kind: input, shape index: {}]
  %s1 = inlined_call_operand.vmem [shape: bf16[288,128], index: 1, kind: input, shape index: {}]
  %s2 = inlined_call_operand.vmem [shape: bf16[288,128], index: 2, kind: input, shape index: {}]
  %s3 = inlined_call_operand.vmem [shape: bf16[288,128], index: 3, kind: input, shape index: {}]
  %s4 = inlined_call_operand.vmem [shape: bf16[128,8], index: 4, kind: input, shape index: {}]
  %s5 = inlined_call_operand.vmem [shape: f32[1,8], index: 5, kind: input, shape index: {}]
  %s6 = inlined_call_operand.vmem [shape: f32[288,8], index: 6, kind: output, shape index: {}]
  %s7 = sld [smem:[#allocation0]]
  $region34: #{convnet_forward.3} parent=0
    _
  %s9 = ssub.s32 1, %s7
  %s10 = scalar_select 0, %s9, %s7
  // Predicated region
  $region2: #{convnet_forward.3} parent=0 // pred_check
    _
  $region3: #{convnet_forward.3} parent=0 // pred_check_branch
    %12 = sbr.rel (0) target = $region5
  $region4: #{convnet_forward.3} parent=0 // pred_region
    _
  $region5: #{convnet_forward.3} parent=0 // pred_fallthru
    _
  // Predicated region
  $region6: #{convnet_forward.3} parent=0 // pred_check
    _
  $region7: #{convnet_forward.3} parent=0 // pred_check_branch
    %14 = sbr.rel (0) target = $region9
  $region8: #{convnet_forward.3} parent=0 // pred_region
    _
  $region9: #{convnet_forward.3} parent=0 // pred_fallthru
    _
  // Predicated region
  $region10: #{convnet_forward.3} parent=0 // pred_check
    _
  $region11: #{convnet_forward.3} parent=0 // pred_check_branch
    %16 = sbr.rel (0) target = $region13
  $region12: #{convnet_forward.3} parent=0 // pred_region
    _
  $region13: #{convnet_forward.3} parent=0 // pred_fallthru
    _
  // Predicated region
  $region14: #{convnet_forward.3} parent=0 // pred_check
    _
  $region15: #{convnet_forward.3} parent=0 // pred_check_branch
    %18 = sbr.rel (0) target = $region17
  $region16: #{convnet_forward.3} parent=0 // pred_region
    _
  $region17: #{convnet_forward.3} parent=0 // pred_fallthru
    _
  // Predicated region
  $region18: #{convnet_forward.3} parent=0 // pred_check
    _
  $region19: #{convnet_forward.3} parent=0 // pred_check_branch
    %20 = sbr.rel (0) target = $region21
  $region20: #{convnet_forward.3} parent=0 // pred_region
    _
  $region21: #{convnet_forward.3} parent=0 // pred_fallthru
    _
  // Predicated region
  $region22: #{convnet_forward.3} parent=0 // pred_check
    _
  $region23: #{convnet_forward.3} parent=0 // pred_check_branch
    %22 = sbr.rel (0) target = $region25
  $region24: #{convnet_forward.3} parent=0 // pred_region
    _
  $region25: #{convnet_forward.3} parent=0 // pred_fallthru
    _
  %v23 = vld [vmem:[%s4] sm:$0xf]
  %v24 = vld [vmem:[%s4 + $0x4] sm:$0xf]
  %v25 = vld [vmem:[%s4 + $0x8] sm:$0xf]
  %v26 = vld [vmem:[%s4 + $0xc] sm:$0xf]
  %v27 = vld [vmem:[%s4 + $0x10] sm:$0xf]
  %v28 = vld [vmem:[%s4 + $0x14] sm:$0xf]
  %v29 = vld [vmem:[%s4 + $0x18] sm:$0xf]
  %v30 = vld [vmem:[%s4 + $0x1c] sm:$0xf]
  %v31 = vld [vmem:[%s4 + $0x20] sm:$0xf]
  %v32 = vld [vmem:[%s4 + $0x24] sm:$0xf]
  %v33 = vld [vmem:[%s4 + $0x28] sm:$0xf]
  %v34 = vld [vmem:[%s4 + $0x2c] sm:$0xf]
  %v35 = vld [vmem:[%s4 + $0x30] sm:$0xf]
  %v36 = vld [vmem:[%s4 + $0x34] sm:$0xf]
  %v37 = vld [vmem:[%s4 + $0x38] sm:$0xf]
  %v38 = vld [vmem:[%s4 + $0x3c] sm:$0xf]
  %v39 = vld [vmem:[%s0] sm:$0xf]
  %v40 = vld [vmem:[%s0 + $0x4] sm:$0xf]
  %v41 = vld [vmem:[%s0 + $0x8] sm:$0xf]
  %v42 = vld [vmem:[%s0 + $0xc] sm:$0xf]
  %v43 = vld [vmem:[%s0 + $0x10] sm:$0xf]
  %v44 = vld [vmem:[%s0 + $0x14] sm:$0xf]
  %v45 = vld [vmem:[%s0 + $0x18] sm:$0xf]
  %v46 = vld [vmem:[%s0 + $0x1c] sm:$0xf]
  %v47 = vld [vmem:[%s0 + $0x20] sm:$0xf]
  %v48 = vld [vmem:[%s0 + $0x24] sm:$0xf]
  %v49 = vld [vmem:[%s0 + $0x28] sm:$0xf]
  %v50 = vld [vmem:[%s0 + $0x2c] sm:$0xf]
  %v51 = vld [vmem:[%s0 + $0x30] sm:$0xf]
  %v52 = vld [vmem:[%s0 + $0x34] sm:$0xf]
  %v53 = vld [vmem:[%s0 + $0x38] sm:$0xf]
  %v54 = vld [vmem:[%s0 + $0x3c] sm:$0xf]
  %v55 = vld [vmem:[%s0 + $0x40] sm:$0xf]
  %v56 = vld [vmem:[%s0 + $0x44] sm:$0xf]
  %v57 = vld [vmem:[%s0 + $0x48] sm:$0xf]
  %v58 = vld [vmem:[%s0 + $0x4c] sm:$0xf]
  %v59 = vld [vmem:[%s0 + $0x50] sm:$0xf]
  %v60 = vld [vmem:[%s0 + $0x54] sm:$0xf]
  %v61 = vld [vmem:[%s0 + $0x58] sm:$0xf]
  %v62 = vld [vmem:[%s0 + $0x5c] sm:$0xf]
  %v63 = vld [vmem:[%s0 + $0x60] sm:$0xf]
  %v64 = vld [vmem:[%s0 + $0x64] sm:$0xf]
  %v65 = vld [vmem:[%s0 + $0x68] sm:$0xf]
  %v66 = vld [vmem:[%s0 + $0x6c] sm:$0xf]
  %v67 = vld [vmem:[%s0 + $0x70] sm:$0xf]
  %v68 = vld [vmem:[%s0 + $0x74] sm:$0xf]
  %v69 = vld [vmem:[%s0 + $0x78] sm:$0xf]
  %v70 = vld [vmem:[%s0 + $0x7c] sm:$0xf]
  %v71 = vld [vmem:[%s0 + $0x80] sm:$0xf]
  %v72 = vld [vmem:[%s0 + $0x84] sm:$0xf]
  %v73 = vld [vmem:[%s0 + $0x88] sm:$0xf]
  %v74 = vld [vmem:[%s0 + $0x8c] sm:$0xf]
  %v111 = vunpack.c.l.b16 %v39
  %v112 = vunpack.c.l.b16 %v40
  %v113 = vunpack.c.l.b16 %v41
  %v114 = vunpack.c.l.b16 %v42
  %v115 = vunpack.c.l.b16 %v43
  %v116 = vunpack.c.l.b16 %v44
  %v117 = vunpack.c.l.b16 %v45
  %v118 = vunpack.c.l.b16 %v46
  %v119 = vunpack.c.l.b16 %v47
  %v120 = vunpack.c.l.b16 %v48
  %v121 = vunpack.c.l.b16 %v49
  %v122 = vunpack.c.l.b16 %v50
  %v123 = vunpack.c.l.b16 %v51
  %v124 = vunpack.c.l.b16 %v52
  %v125 = vunpack.c.l.b16 %v53
  %v126 = vunpack.c.l.b16 %v54
  %v127 = vunpack.c.l.b16 %v55
  %v128 = vunpack.c.l.b16 %v56
  %v129 = vunpack.c.l.b16 %v57
  %v130 = vunpack.c.l.b16 %v58
  %v131 = vunpack.c.l.b16 %v59
  %v132 = vunpack.c.l.b16 %v60
  %v133 = vunpack.c.l.b16 %v61
  %v134 = vunpack.c.l.b16 %v62
  %v135 = vunpack.c.l.b16 %v63
  %v136 = vunpack.c.l.b16 %v64
  %v137 = vunpack.c.l.b16 %v65
  %v138 = vunpack.c.l.b16 %v66
  %v139 = vunpack.c.l.b16 %v67
  %v140 = vunpack.c.l.b16 %v68
  %v141 = vunpack.c.l.b16 %v69
  %v142 = vunpack.c.l.b16 %v70
  %v143 = vunpack.c.l.b16 %v71
  %v144 = vunpack.c.l.b16 %v72
  %v145 = vunpack.c.l.b16 %v73
  %v146 = vunpack.c.l.b16 %v74
  %v147 = vpack.c.b16 %v112, %v111
  %v148 = vpack.c.b16 %v114, %v113
  %v149 = vpack.c.b16 %v116, %v115
  %v150 = vpack.c.b16 %v118, %v117
  %v151 = vpack.c.b16 %v120, %v119
  %v152 = vpack.c.b16 %v122, %v121
  %v153 = vpack.c.b16 %v124, %v123
  %v154 = vpack.c.b16 %v126, %v125
  %v155 = vpack.c.b16 %v128, %v127
  %v156 = vpack.c.b16 %v130, %v129
  %v157 = vpack.c.b16 %v132, %v131
  %v158 = vpack.c.b16 %v134, %v133
  %v159 = vpack.c.b16 %v136, %v135
  %v160 = vpack.c.b16 %v138, %v137
  %v161 = vpack.c.b16 %v140, %v139
  %v162 = vpack.c.b16 %v142, %v141
  %v163 = vpack.c.b16 %v144, %v143
  %v164 = vpack.c.b16 %v146, %v145
  %v199 = vunpack.c.l.b16 %v23
  %v200 = vunpack.c.l.b16 %v24
  %v201 = vunpack.c.l.b16 %v25
  %v202 = vunpack.c.l.b16 %v26
  %v203 = vunpack.c.l.b16 %v27
  %v204 = vunpack.c.l.b16 %v28
  %v205 = vunpack.c.l.b16 %v29
  %v206 = vunpack.c.l.b16 %v30
  %v207 = vunpack.c.l.b16 %v31
  %v208 = vunpack.c.l.b16 %v32
  %v209 = vunpack.c.l.b16 %v33
  %v210 = vunpack.c.l.b16 %v34
  %v211 = vunpack.c.l.b16 %v35
  %v212 = vunpack.c.l.b16 %v36
  %v213 = vunpack.c.l.b16 %v37
  %v214 = vunpack.c.l.b16 %v38
  %v215 = vpack.c.b16 %v200, %v199
  %v216 = vpack.c.b16 %v202, %v201
  %v217 = vpack.c.b16 %v204, %v203
  %v218 = vpack.c.b16 %v206, %v205
  %v219 = vpack.c.b16 %v208, %v207
  %v220 = vpack.c.b16 %v210, %v209
  %v221 = vpack.c.b16 %v212, %v211
  %v222 = vpack.c.b16 %v214, %v213
  %231 = vmatpush.bf16.msra.mxu0 %v222
  %232 = vmatpush.bf16.msra.mxu0 %v221
  %233 = vmatpush.bf16.msra.mxu0 %v220
  %234 = vmatpush.bf16.msra.mxu0 %v219
  %235 = vmatpush.bf16.msra.mxu0 %v218
  %236 = vmatpush.bf16.msra.mxu0 %v217
  %237 = vmatpush.bf16.msra.mxu0 %v216
  %238 = vmatpush.bf16.msra.mxu0 %v215
  %239 = vmatmul.bf16.gmra.mxu0 %v147
  %v240 = vpop.f32.mrf.mxu0
  %v241 = vadd.f32 0.0, %v240
  %v242 = vpop.f32.mrf.mxu0
  %v243 = vadd.f32 0.0, %v242
  %244 = vmatmul.bf16.gmra.mxu0 %v148
  %v245 = vpop.f32.mrf.mxu0
  %v246 = vadd.f32 0.0, %v245
  %v247 = vpop.f32.mrf.mxu0
  %v248 = vadd.f32 0.0, %v247
  %249 = vmatmul.bf16.gmra.mxu0 %v149
  %v250 = vpop.f32.mrf.mxu0
  %v251 = vadd.f32 0.0, %v250
  %v252 = vpop.f32.mrf.mxu0
  %v253 = vadd.f32 0.0, %v252
  %254 = vmatmul.bf16.gmra.mxu0 %v150
  %v255 = vpop.f32.mrf.mxu0
  %v256 = vadd.f32 0.0, %v255
  %v257 = vpop.f32.mrf.mxu0
  %v258 = vadd.f32 0.0, %v257
  %259 = vmatmul.bf16.gmra.mxu0 %v151
  %v260 = vpop.f32.mrf.mxu0
  %v261 = vadd.f32 0.0, %v260
  %v262 = vpop.f32.mrf.mxu0
  %v263 = vadd.f32 0.0, %v262
  %264 = vmatmul.bf16.gmra.mxu0 %v152
  %v265 = vpop.f32.mrf.mxu0
  %v266 = vadd.f32 0.0, %v265
  %v267 = vpop.f32.mrf.mxu0
  %v268 = vadd.f32 0.0, %v267
  %269 = vmatmul.bf16.gmra.mxu0 %v153
  %v270 = vpop.f32.mrf.mxu0
  %v271 = vadd.f32 0.0, %v270
  %v272 = vpop.f32.mrf.mxu0
  %v273 = vadd.f32 0.0, %v272
  %274 = vmatmul.bf16.gmra.mxu0 %v154
  %v275 = vpop.f32.mrf.mxu0
  %v276 = vadd.f32 0.0, %v275
  %v277 = vpop.f32.mrf.mxu0
  %v278 = vadd.f32 0.0, %v277
  %279 = vmatmul.bf16.gmra.mxu0 %v155
  %v280 = vpop.f32.mrf.mxu0
  %v281 = vadd.f32 0.0, %v280
  %v282 = vpop.f32.mrf.mxu0
  %v283 = vadd.f32 0.0, %v282
  %284 = vmatmul.bf16.gmra.mxu0 %v156
  %v285 = vpop.f32.mrf.mxu0
  %v286 = vadd.f32 0.0, %v285
  %v287 = vpop.f32.mrf.mxu0
  %v288 = vadd.f32 0.0, %v287
  %289 = vmatmul.bf16.gmra.mxu0 %v157
  %v290 = vpop.f32.mrf.mxu0
  %v291 = vadd.f32 0.0, %v290
  %v292 = vpop.f32.mrf.mxu0
  %v293 = vadd.f32 0.0, %v292
  %294 = vmatmul.bf16.gmra.mxu0 %v158
  %v295 = vpop.f32.mrf.mxu0
  %v296 = vadd.f32 0.0, %v295
  %v297 = vpop.f32.mrf.mxu0
  %v298 = vadd.f32 0.0, %v297
  %299 = vmatmul.bf16.gmra.mxu0 %v159
  %v300 = vpop.f32.mrf.mxu0
  %v301 = vadd.f32 0.0, %v300
  %v302 = vpop.f32.mrf.mxu0
  %v303 = vadd.f32 0.0, %v302
  %304 = vmatmul.bf16.gmra.mxu0 %v160
  %v305 = vpop.f32.mrf.mxu0
  %v306 = vadd.f32 0.0, %v305
  %v307 = vpop.f32.mrf.mxu0
  %v308 = vadd.f32 0.0, %v307
  %309 = vmatmul.bf16.gmra.mxu0 %v161
  %v310 = vpop.f32.mrf.mxu0
  %v311 = vadd.f32 0.0, %v310
  %v312 = vpop.f32.mrf.mxu0
  %v313 = vadd.f32 0.0, %v312
  %314 = vmatmul.bf16.gmra.mxu0 %v162
  %v315 = vpop.f32.mrf.mxu0
  %v316 = vadd.f32 0.0, %v315
  %v317 = vpop.f32.mrf.mxu0
  %v318 = vadd.f32 0.0, %v317
  %319 = vmatmul.bf16.gmra.mxu0 %v163
  %v320 = vpop.f32.mrf.mxu0
  %v321 = vadd.f32 0.0, %v320
  %v322 = vpop.f32.mrf.mxu0
  %v323 = vadd.f32 0.0, %v322
  %324 = vmatmul.bf16.gmra.mxu0 %v164
  %v325 = vpop.f32.mrf.mxu0
  %v326 = vadd.f32 0.0, %v325
  %v327 = vpop.f32.mrf.mxu0
  %v328 = vadd.f32 0.0, %v327
  %329 = vdwg.mxu0
  %v330 = vld [vmem:[%s1] sm:$0xf]
  %v331 = vld [vmem:[%s1 + $0x4] sm:$0xf]
  %v332 = vld [vmem:[%s1 + $0x8] sm:$0xf]
  %v333 = vld [vmem:[%s1 + $0xc] sm:$0xf]
  %v334 = vld [vmem:[%s1 + $0x10] sm:$0xf]
  %v335 = vld [vmem:[%s1 + $0x14] sm:$0xf]
  %v336 = vld [vmem:[%s1 + $0x18] sm:$0xf]
  %v337 = vld [vmem:[%s1 + $0x1c] sm:$0xf]
  %v338 = vld [vmem:[%s1 + $0x20] sm:$0xf]
  %v339 = vld [vmem:[%s1 + $0x24] sm:$0xf]
  %v340 = vld [vmem:[%s1 + $0x28] sm:$0xf]
  %v341 = vld [vmem:[%s1 + $0x2c] sm:$0xf]
  %v342 = vld [vmem:[%s1 + $0x30] sm:$0xf]
  %v343 = vld [vmem:[%s1 + $0x34] sm:$0xf]
  %v344 = vld [vmem:[%s1 + $0x38] sm:$0xf]
  %v345 = vld [vmem:[%s1 + $0x3c] sm:$0xf]
  %v346 = vld [vmem:[%s1 + $0x40] sm:$0xf]
  %v347 = vld [vmem:[%s1 + $0x44] sm:$0xf]
  %v348 = vld [vmem:[%s1 + $0x48] sm:$0xf]
  %v349 = vld [vmem:[%s1 + $0x4c] sm:$0xf]
  %v350 = vld [vmem:[%s1 + $0x50] sm:$0xf]
  %v351 = vld [vmem:[%s1 + $0x54] sm:$0xf]
  %v352 = vld [vmem:[%s1 + $0x58] sm:$0xf]
  %v353 = vld [vmem:[%s1 + $0x5c] sm:$0xf]
  %v354 = vld [vmem:[%s1 + $0x60] sm:$0xf]
  %v355 = vld [vmem:[%s1 + $0x64] sm:$0xf]
  %v356 = vld [vmem:[%s1 + $0x68] sm:$0xf]
  %v357 = vld [vmem:[%s1 + $0x6c] sm:$0xf]
  %v358 = vld [vmem:[%s1 + $0x70] sm:$0xf]
  %v359 = vld [vmem:[%s1 + $0x74] sm:$0xf]
  %v360 = vld [vmem:[%s1 + $0x78] sm:$0xf]
  %v361 = vld [vmem:[%s1 + $0x7c] sm:$0xf]
  %v362 = vld [vmem:[%s1 + $0x80] sm:$0xf]
  %v363 = vld [vmem:[%s1 + $0x84] sm:$0xf]
  %v364 = vld [vmem:[%s1 + $0x88] sm:$0xf]
  %v365 = vld [vmem:[%s1 + $0x8c] sm:$0xf]
  %v402 = vunpack.c.l.b16 %v330
  %v403 = vunpack.c.l.b16 %v331
  %v404 = vunpack.c.l.b16 %v332
  %v405 = vunpack.c.l.b16 %v333
  %v406 = vunpack.c.l.b16 %v334
  %v407 = vunpack.c.l.b16 %v335
  %v408 = vunpack.c.l.b16 %v336
  %v409 = vunpack.c.l.b16 %v337
  %v410 = vunpack.c.l.b16 %v338
  %v411 = vunpack.c.l.b16 %v339
  %v412 = vunpack.c.l.b16 %v340
  %v413 = vunpack.c.l.b16 %v341
  %v414 = vunpack.c.l.b16 %v342
  %v415 = vunpack.c.l.b16 %v343
  %v416 = vunpack.c.l.b16 %v344
  %v417 = vunpack.c.l.b16 %v345
  %v418 = vunpack.c.l.b16 %v346
  %v419 = vunpack.c.l.b16 %v347
  %v420 = vunpack.c.l.b16 %v348
  %v421 = vunpack.c.l.b16 %v349
  %v422 = vunpack.c.l.b16 %v350
  %v423 = vunpack.c.l.b16 %v351
  %v424 = vunpack.c.l.b16 %v352
  %v425 = vunpack.c.l.b16 %v353
  %v426 = vunpack.c.l.b16 %v354
  %v427 = vunpack.c.l.b16 %v355
  %v428 = vunpack.c.l.b16 %v356
  %v429 = vunpack.c.l.b16 %v357
  %v430 = vunpack.c.l.b16 %v358
  %v431 = vunpack.c.l.b16 %v359
  %v432 = vunpack.c.l.b16 %v360
  %v433 = vunpack.c.l.b16 %v361
  %v434 = vunpack.c.l.b16 %v362
  %v435 = vunpack.c.l.b16 %v363
  %v436 = vunpack.c.l.b16 %v364
  %v437 = vunpack.c.l.b16 %v365
  %v438 = vpack.c.b16 %v403, %v402
  %v439 = vpack.c.b16 %v405, %v404
  %v440 = vpack.c.b16 %v407, %v406
  %v441 = vpack.c.b16 %v409, %v408
  %v442 = vpack.c.b16 %v411, %v410
  %v443 = vpack.c.b16 %v413, %v412
  %v444 = vpack.c.b16 %v415, %v414
  %v445 = vpack.c.b16 %v417, %v416
  %v446 = vpack.c.b16 %v419, %v418
  %v447 = vpack.c.b16 %v421, %v420
  %v448 = vpack.c.b16 %v423, %v422
  %v449 = vpack.c.b16 %v425, %v424
  %v450 = vpack.c.b16 %v427, %v426
  %v451 = vpack.c.b16 %v429, %v428
  %v452 = vpack.c.b16 %v431, %v430
  %v453 = vpack.c.b16 %v433, %v432
  %v454 = vpack.c.b16 %v435, %v434
  %v455 = vpack.c.b16 %v437, %v436
  %474 = vmatpush.bf16.msra.mxu0 %v222
  %475 = vmatpush.bf16.msra.mxu0 %v221
  %476 = vmatpush.bf16.msra.mxu0 %v220
  %477 = vmatpush.bf16.msra.mxu0 %v219
  %478 = vmatpush.bf16.msra.mxu0 %v218
  %479 = vmatpush.bf16.msra.mxu0 %v217
  %480 = vmatpush.bf16.msra.mxu0 %v216
  %481 = vmatpush.bf16.msra.mxu0 %v215
  %482 = vmatmul.bf16.gmra.mxu0 %v438
  %v483 = vpop.f32.mrf.mxu0
  %v484 = vadd.f32 0.0, %v483
  %v485 = vpop.f32.mrf.mxu0
  %v486 = vadd.f32 0.0, %v485
  %487 = vmatmul.bf16.gmra.mxu0 %v439
  %v488 = vpop.f32.mrf.mxu0
  %v489 = vadd.f32 0.0, %v488
  %v490 = vpop.f32.mrf.mxu0
  %v491 = vadd.f32 0.0, %v490
  %492 = vmatmul.bf16.gmra.mxu0 %v440
  %v493 = vpop.f32.mrf.mxu0
  %v494 = vadd.f32 0.0, %v493
  %v495 = vpop.f32.mrf.mxu0
  %v496 = vadd.f32 0.0, %v495
  %497 = vmatmul.bf16.gmra.mxu0 %v441
  %v498 = vpop.f32.mrf.mxu0
  %v499 = vadd.f32 0.0, %v498
  %v500 = vpop.f32.mrf.mxu0
  %v501 = vadd.f32 0.0, %v500
  %502 = vmatmul.bf16.gmra.mxu0 %v442
  %v503 = vpop.f32.mrf.mxu0
  %v504 = vadd.f32 0.0, %v503
  %v505 = vpop.f32.mrf.mxu0
  %v506 = vadd.f32 0.0, %v505
  %507 = vmatmul.bf16.gmra.mxu0 %v443
  %v508 = vpop.f32.mrf.mxu0
  %v509 = vadd.f32 0.0, %v508
  %v510 = vpop.f32.mrf.mxu0
  %v511 = vadd.f32 0.0, %v510
  %512 = vmatmul.bf16.gmra.mxu0 %v444
  %v513 = vpop.f32.mrf.mxu0
  %v514 = vadd.f32 0.0, %v513
  %v515 = vpop.f32.mrf.mxu0
  %v516 = vadd.f32 0.0, %v515
  %517 = vmatmul.bf16.gmra.mxu0 %v445
  %v518 = vpop.f32.mrf.mxu0
  %v519 = vadd.f32 0.0, %v518
  %v520 = vpop.f32.mrf.mxu0
  %v521 = vadd.f32 0.0, %v520
  %522 = vmatmul.bf16.gmra.mxu0 %v446
  %v523 = vpop.f32.mrf.mxu0
  %v524 = vadd.f32 0.0, %v523
  %v525 = vpop.f32.mrf.mxu0
  %v526 = vadd.f32 0.0, %v525
  %527 = vmatmul.bf16.gmra.mxu0 %v447
  %v528 = vpop.f32.mrf.mxu0
  %v529 = vadd.f32 0.0, %v528
  %v530 = vpop.f32.mrf.mxu0
  %v531 = vadd.f32 0.0, %v530
  %532 = vmatmul.bf16.gmra.mxu0 %v448
  %v533 = vpop.f32.mrf.mxu0
  %v534 = vadd.f32 0.0, %v533
  %v535 = vpop.f32.mrf.mxu0
  %v536 = vadd.f32 0.0, %v535
  %537 = vmatmul.bf16.gmra.mxu0 %v449
  %v538 = vpop.f32.mrf.mxu0
  %v539 = vadd.f32 0.0, %v538
  %v540 = vpop.f32.mrf.mxu0
  %v541 = vadd.f32 0.0, %v540
  %542 = vmatmul.bf16.gmra.mxu0 %v450
  %v543 = vpop.f32.mrf.mxu0
  %v544 = vadd.f32 0.0, %v543
  %v545 = vpop.f32.mrf.mxu0
  %v546 = vadd.f32 0.0, %v545
  %547 = vmatmul.bf16.gmra.mxu0 %v451
  %v548 = vpop.f32.mrf.mxu0
  %v549 = vadd.f32 0.0, %v548
  %v550 = vpop.f32.mrf.mxu0
  %v551 = vadd.f32 0.0, %v550
  %552 = vmatmul.bf16.gmra.mxu0 %v452
  %v553 = vpop.f32.mrf.mxu0
  %v554 = vadd.f32 0.0, %v553
  %v555 = vpop.f32.mrf.mxu0
  %v556 = vadd.f32 0.0, %v555
  %557 = vmatmul.bf16.gmra.mxu0 %v453
  %v558 = vpop.f32.mrf.mxu0
  %v559 = vadd.f32 0.0, %v558
  %v560 = vpop.f32.mrf.mxu0
  %v561 = vadd.f32 0.0, %v560
  %562 = vmatmul.bf16.gmra.mxu0 %v454
  %v563 = vpop.f32.mrf.mxu0
  %v564 = vadd.f32 0.0, %v563
  %v565 = vpop.f32.mrf.mxu0
  %v566 = vadd.f32 0.0, %v565
  %567 = vmatmul.bf16.gmra.mxu0 %v455
  %v568 = vpop.f32.mrf.mxu0
  %v569 = vadd.f32 0.0, %v568
  %v570 = vpop.f32.mrf.mxu0
  %v571 = vadd.f32 0.0, %v570
  %572 = vdwg.mxu0
  %v573 = vmax.f32 %v241, %v484
  %v574 = vmax.f32 %v243, %v486
  %v575 = vmax.f32 %v246, %v489
  %v576 = vmax.f32 %v248, %v491
  %v577 = vmax.f32 %v251, %v494
  %v578 = vmax.f32 %v253, %v496
  %v579 = vmax.f32 %v256, %v499
  %v580 = vmax.f32 %v258, %v501
  %v581 = vmax.f32 %v261, %v504
  %v582 = vmax.f32 %v263, %v506
  %v583 = vmax.f32 %v266, %v509
  %v584 = vmax.f32 %v268, %v511
  %v585 = vmax.f32 %v271, %v514
  %v586 = vmax.f32 %v273, %v516
  %v587 = vmax.f32 %v276, %v519
  %v588 = vmax.f32 %v278, %v521
  %v589 = vmax.f32 %v281, %v524
  %v590 = vmax.f32 %v283, %v526
  %v591 = vmax.f32 %v286, %v529
  %v592 = vmax.f32 %v288, %v531
  %v593 = vmax.f32 %v291, %v534
  %v594 = vmax.f32 %v293, %v536
  %v595 = vmax.f32 %v296, %v539
  %v596 = vmax.f32 %v298, %v541
  %v597 = vmax.f32 %v301, %v544
  %v598 = vmax.f32 %v303, %v546
  %v599 = vmax.f32 %v306, %v549
  %v600 = vmax.f32 %v308, %v551
  %v601 = vmax.f32 %v311, %v554
  %v602 = vmax.f32 %v313, %v556
  %v603 = vmax.f32 %v316, %v559
  %v604 = vmax.f32 %v318, %v561
  %v605 = vmax.f32 %v321, %v564
  %v606 = vmax.f32 %v323, %v566
  %v607 = vmax.f32 %v326, %v569
  %v608 = vmax.f32 %v328, %v571
  %v609 = vld [vmem:[%s2] sm:$0xf]
  %v610 = vld [vmem:[%s2 + $0x4] sm:$0xf]
  %v611 = vld [vmem:[%s2 + $0x8] sm:$0xf]
  %v612 = vld [vmem:[%s2 + $0xc] sm:$0xf]
  %v613 = vld [vmem:[%s2 + $0x10] sm:$0xf]
  %v614 = vld [vmem:[%s2 + $0x14] sm:$0xf]
  %v615 = vld [vmem:[%s2 + $0x18] sm:$0xf]
  %v616 = vld [vmem:[%s2 + $0x1c] sm:$0xf]
  %v617 = vld [vmem:[%s2 + $0x20] sm:$0xf]
  %v618 = vld [vmem:[%s2 + $0x24] sm:$0xf]
  %v619 = vld [vmem:[%s2 + $0x28] sm:$0xf]
  %v620 = vld [vmem:[%s2 + $0x2c] sm:$0xf]
  %v621 = vld [vmem:[%s2 + $0x30] sm:$0xf]
  %v622 = vld [vmem:[%s2 + $0x34] sm:$0xf]
  %v623 = vld [vmem:[%s2 + $0x38] sm:$0xf]
  %v624 = vld [vmem:[%s2 + $0x3c] sm:$0xf]
  %v625 = vld [vmem:[%s2 + $0x40] sm:$0xf]
  %v626 = vld [vmem:[%s2 + $0x44] sm:$0xf]
  %v627 = vld [vmem:[%s2 + $0x48] sm:$0xf]
  %v628 = vld [vmem:[%s2 + $0x4c] sm:$0xf]
  %v629 = vld [vmem:[%s2 + $0x50] sm:$0xf]
  %v630 = vld [vmem:[%s2 + $0x54] sm:$0xf]
  %v631 = vld [vmem:[%s2 + $0x58] sm:$0xf]
  %v632 = vld [vmem:[%s2 + $0x5c] sm:$0xf]
  %v633 = vld [vmem:[%s2 + $0x60] sm:$0xf]
  %v634 = vld [vmem:[%s2 + $0x64] sm:$0xf]
  %v635 = vld [vmem:[%s2 + $0x68] sm:$0xf]
  %v636 = vld [vmem:[%s2 + $0x6c] sm:$0xf]
  %v637 = vld [vmem:[%s2 + $0x70] sm:$0xf]
  %v638 = vld [vmem:[%s2 + $0x74] sm:$0xf]
  %v639 = vld [vmem:[%s2 + $0x78] sm:$0xf]
  %v640 = vld [vmem:[%s2 + $0x7c] sm:$0xf]
  %v641 = vld [vmem:[%s2 + $0x80] sm:$0xf]
  %v642 = vld [vmem:[%s2 + $0x84] sm:$0xf]
  %v643 = vld [vmem:[%s2 + $0x88] sm:$0xf]
  %v644 = vld [vmem:[%s2 + $0x8c] sm:$0xf]
  %v681 = vunpack.c.l.b16 %v609
  %v682 = vunpack.c.l.b16 %v610
  %v683 = vunpack.c.l.b16 %v611
  %v684 = vunpack.c.l.b16 %v612
  %v685 = vunpack.c.l.b16 %v613
  %v686 = vunpack.c.l.b16 %v614
  %v687 = vunpack.c.l.b16 %v615
  %v688 = vunpack.c.l.b16 %v616
  %v689 = vunpack.c.l.b16 %v617
  %v690 = vunpack.c.l.b16 %v618
  %v691 = vunpack.c.l.b16 %v619
  %v692 = vunpack.c.l.b16 %v620
  %v693 = vunpack.c.l.b16 %v621
  %v694 = vunpack.c.l.b16 %v622
  %v695 = vunpack.c.l.b16 %v623
  %v696 = vunpack.c.l.b16 %v624
  %v697 = vunpack.c.l.b16 %v625
  %v698 = vunpack.c.l.b16 %v626
  %v699 = vunpack.c.l.b16 %v627
  %v700 = vunpack.c.l.b16 %v628
  %v701 = vunpack.c.l.b16 %v629
  %v702 = vunpack.c.l.b16 %v630
  %v703 = vunpack.c.l.b16 %v631
  %v704 = vunpack.c.l.b16 %v632
  %v705 = vunpack.c.l.b16 %v633
  %v706 = vunpack.c.l.b16 %v634
  %v707 = vunpack.c.l.b16 %v635
  %v708 = vunpack.c.l.b16 %v636
  %v709 = vunpack.c.l.b16 %v637
  %v710 = vunpack.c.l.b16 %v638
  %v711 = vunpack.c.l.b16 %v639
  %v712 = vunpack.c.l.b16 %v640
  %v713 = vunpack.c.l.b16 %v641
  %v714 = vunpack.c.l.b16 %v642
  %v715 = vunpack.c.l.b16 %v643
  %v716 = vunpack.c.l.b16 %v644
  %v717 = vpack.c.b16 %v682, %v681
  %v718 = vpack.c.b16 %v684, %v683
  %v719 = vpack.c.b16 %v686, %v685
  %v720 = vpack.c.b16 %v688, %v687
  %v721 = vpack.c.b16 %v690, %v689
  %v722 = vpack.c.b16 %v692, %v691
  %v723 = vpack.c.b16 %v694, %v693
  %v724 = vpack.c.b16 %v696, %v695
  %v725 = vpack.c.b16 %v698, %v697
  %v726 = vpack.c.b16 %v700, %v699
  %v727 = vpack.c.b16 %v702, %v701
  %v728 = vpack.c.b16 %v704, %v703
  %v729 = vpack.c.b16 %v706, %v705
  %v730 = vpack.c.b16 %v708, %v707
  %v731 = vpack.c.b16 %v710, %v709
  %v732 = vpack.c.b16 %v712, %v711
  %v733 = vpack.c.b16 %v714, %v713
  %v734 = vpack.c.b16 %v716, %v715
  %753 = vmatpush.bf16.msra.mxu0 %v222
  %754 = vmatpush.bf16.msra.mxu0 %v221
  %755 = vmatpush.bf16.msra.mxu0 %v220
  %756 = vmatpush.bf16.msra.mxu0 %v219
  %757 = vmatpush.bf16.msra.mxu0 %v218
  %758 = vmatpush.bf16.msra.mxu0 %v217
  %759 = vmatpush.bf16.msra.mxu0 %v216
  %760 = vmatpush.bf16.msra.mxu0 %v215
  %761 = vmatmul.bf16.gmra.mxu0 %v717
  %v762 = vpop.f32.mrf.mxu0
  %v763 = vadd.f32 0.0, %v762
  %v764 = vpop.f32.mrf.mxu0
  %v765 = vadd.f32 0.0, %v764
  %766 = vmatmul.bf16.gmra.mxu0 %v718
  %v767 = vpop.f32.mrf.mxu0
  %v768 = vadd.f32 0.0, %v767
  %v769 = vpop.f32.mrf.mxu0
  %v770 = vadd.f32 0.0, %v769
  %771 = vmatmul.bf16.gmra.mxu0 %v719
  %v772 = vpop.f32.mrf.mxu0
  %v773 = vadd.f32 0.0, %v772
  %v774 = vpop.f32.mrf.mxu0
  %v775 = vadd.f32 0.0, %v774
  %776 = vmatmul.bf16.gmra.mxu0 %v720
  %v777 = vpop.f32.mrf.mxu0
  %v778 = vadd.f32 0.0, %v777
  %v779 = vpop.f32.mrf.mxu0
  %v780 = vadd.f32 0.0, %v779
  %781 = vmatmul.bf16.gmra.mxu0 %v721
  %v782 = vpop.f32.mrf.mxu0
  %v783 = vadd.f32 0.0, %v782
  %v784 = vpop.f32.mrf.mxu0
  %v785 = vadd.f32 0.0, %v784
  %786 = vmatmul.bf16.gmra.mxu0 %v722
  %v787 = vpop.f32.mrf.mxu0
  %v788 = vadd.f32 0.0, %v787
  %v789 = vpop.f32.mrf.mxu0
  %v790 = vadd.f32 0.0, %v789
  %791 = vmatmul.bf16.gmra.mxu0 %v723
  %v792 = vpop.f32.mrf.mxu0
  %v793 = vadd.f32 0.0, %v792
  %v794 = vpop.f32.mrf.mxu0
  %v795 = vadd.f32 0.0, %v794
  %796 = vmatmul.bf16.gmra.mxu0 %v724
  %v797 = vpop.f32.mrf.mxu0
  %v798 = vadd.f32 0.0, %v797
  %v799 = vpop.f32.mrf.mxu0
  %v800 = vadd.f32 0.0, %v799
  %801 = vmatmul.bf16.gmra.mxu0 %v725
  %v802 = vpop.f32.mrf.mxu0
  %v803 = vadd.f32 0.0, %v802
  %v804 = vpop.f32.mrf.mxu0
  %v805 = vadd.f32 0.0, %v804
  %806 = vmatmul.bf16.gmra.mxu0 %v726
  %v807 = vpop.f32.mrf.mxu0
  %v808 = vadd.f32 0.0, %v807
  %v809 = vpop.f32.mrf.mxu0
  %v810 = vadd.f32 0.0, %v809
  %811 = vmatmul.bf16.gmra.mxu0 %v727
  %v812 = vpop.f32.mrf.mxu0
  %v813 = vadd.f32 0.0, %v812
  %v814 = vpop.f32.mrf.mxu0
  %v815 = vadd.f32 0.0, %v814
  %816 = vmatmul.bf16.gmra.mxu0 %v728
  %v817 = vpop.f32.mrf.mxu0
  %v818 = vadd.f32 0.0, %v817
  %v819 = vpop.f32.mrf.mxu0
  %v820 = vadd.f32 0.0, %v819
  %821 = vmatmul.bf16.gmra.mxu0 %v729
  %v822 = vpop.f32.mrf.mxu0
  %v823 = vadd.f32 0.0, %v822
  %v824 = vpop.f32.mrf.mxu0
  %v825 = vadd.f32 0.0, %v824
  %826 = vmatmul.bf16.gmra.mxu0 %v730
  %v827 = vpop.f32.mrf.mxu0
  %v828 = vadd.f32 0.0, %v827
  %v829 = vpop.f32.mrf.mxu0
  %v830 = vadd.f32 0.0, %v829
  %831 = vmatmul.bf16.gmra.mxu0 %v731
  %v832 = vpop.f32.mrf.mxu0
  %v833 = vadd.f32 0.0, %v832
  %v834 = vpop.f32.mrf.mxu0
  %v835 = vadd.f32 0.0, %v834
  %836 = vmatmul.bf16.gmra.mxu0 %v732
  %v837 = vpop.f32.mrf.mxu0
  %v838 = vadd.f32 0.0, %v837
  %v839 = vpop.f32.mrf.mxu0
  %v840 = vadd.f32 0.0, %v839
  %841 = vmatmul.bf16.gmra.mxu0 %v733
  %v842 = vpop.f32.mrf.mxu0
  %v843 = vadd.f32 0.0, %v842
  %v844 = vpop.f32.mrf.mxu0
  %v845 = vadd.f32 0.0, %v844
  %846 = vmatmul.bf16.gmra.mxu0 %v734
  %v847 = vpop.f32.mrf.mxu0
  %v848 = vadd.f32 0.0, %v847
  %v849 = vpop.f32.mrf.mxu0
  %v850 = vadd.f32 0.0, %v849
  %851 = vdwg.mxu0
  %v852 = vmax.f32 %v573, %v763
  %v853 = vmax.f32 %v574, %v765
  %v854 = vmax.f32 %v575, %v768
  %v855 = vmax.f32 %v576, %v770
  %v856 = vmax.f32 %v577, %v773
  %v857 = vmax.f32 %v578, %v775
  %v858 = vmax.f32 %v579, %v778
  %v859 = vmax.f32 %v580, %v780
  %v860 = vmax.f32 %v581, %v783
  %v861 = vmax.f32 %v582, %v785
  %v862 = vmax.f32 %v583, %v788
  %v863 = vmax.f32 %v584, %v790
  %v864 = vmax.f32 %v585, %v793
  %v865 = vmax.f32 %v586, %v795
  %v866 = vmax.f32 %v587, %v798
  %v867 = vmax.f32 %v588, %v800
  %v868 = vmax.f32 %v589, %v803
  %v869 = vmax.f32 %v590, %v805
  %v870 = vmax.f32 %v591, %v808
  %v871 = vmax.f32 %v592, %v810
  %v872 = vmax.f32 %v593, %v813
  %v873 = vmax.f32 %v594, %v815
  %v874 = vmax.f32 %v595, %v818
  %v875 = vmax.f32 %v596, %v820
  %v876 = vmax.f32 %v597, %v823
  %v877 = vmax.f32 %v598, %v825
  %v878 = vmax.f32 %v599, %v828
  %v879 = vmax.f32 %v600, %v830
  %v880 = vmax.f32 %v601, %v833
  %v881 = vmax.f32 %v602, %v835
  %v882 = vmax.f32 %v603, %v838
  %v883 = vmax.f32 %v604, %v840
  %v884 = vmax.f32 %v605, %v843
  %v885 = vmax.f32 %v606, %v845
  %v886 = vmax.f32 %v607, %v848
  %v887 = vmax.f32 %v608, %v850
  %v888 = vld [vmem:[%s3] sm:$0xf]
  %v889 = vld [vmem:[%s3 + $0x4] sm:$0xf]
  %v890 = vld [vmem:[%s3 + $0x8] sm:$0xf]
  %v891 = vld [vmem:[%s3 + $0xc] sm:$0xf]
  %v892 = vld [vmem:[%s3 + $0x10] sm:$0xf]
  %v893 = vld [vmem:[%s3 + $0x14] sm:$0xf]
  %v894 = vld [vmem:[%s3 + $0x18] sm:$0xf]
  %v895 = vld [vmem:[%s3 + $0x1c] sm:$0xf]
  %v896 = vld [vmem:[%s3 + $0x20] sm:$0xf]
  %v897 = vld [vmem:[%s3 + $0x24] sm:$0xf]
  %v898 = vld [vmem:[%s3 + $0x28] sm:$0xf]
  %v899 = vld [vmem:[%s3 + $0x2c] sm:$0xf]
  %v900 = vld [vmem:[%s3 + $0x30] sm:$0xf]
  %v901 = vld [vmem:[%s3 + $0x34] sm:$0xf]
  %v902 = vld [vmem:[%s3 + $0x38] sm:$0xf]
  %v903 = vld [vmem:[%s3 + $0x3c] sm:$0xf]
  %v904 = vld [vmem:[%s3 + $0x40] sm:$0xf]
  %v905 = vld [vmem:[%s3 + $0x44] sm:$0xf]
  %v906 = vld [vmem:[%s3 + $0x48] sm:$0xf]
  %v907 = vld [vmem:[%s3 + $0x4c] sm:$0xf]
  %v908 = vld [vmem:[%s3 + $0x50] sm:$0xf]
  %v909 = vld [vmem:[%s3 + $0x54] sm:$0xf]
  %v910 = vld [vmem:[%s3 + $0x58] sm:$0xf]
  %v911 = vld [vmem:[%s3 + $0x5c] sm:$0xf]
  %v912 = vld [vmem:[%s3 + $0x60] sm:$0xf]
  %v913 = vld [vmem:[%s3 + $0x64] sm:$0xf]
  %v914 = vld [vmem:[%s3 + $0x68] sm:$0xf]
  %v915 = vld [vmem:[%s3 + $0x6c] sm:$0xf]
  %v916 = vld [vmem:[%s3 + $0x70] sm:$0xf]
  %v917 = vld [vmem:[%s3 + $0x74] sm:$0xf]
  %v918 = vld [vmem:[%s3 + $0x78] sm:$0xf]
  %v919 = vld [vmem:[%s3 + $0x7c] sm:$0xf]
  %v920 = vld [vmem:[%s3 + $0x80] sm:$0xf]
  %v921 = vld [vmem:[%s3 + $0x84] sm:$0xf]
  %v922 = vld [vmem:[%s3 + $0x88] sm:$0xf]
  %v923 = vld [vmem:[%s3 + $0x8c] sm:$0xf]
  %v960 = vunpack.c.l.b16 %v888
  %v961 = vunpack.c.l.b16 %v889
  %v962 = vunpack.c.l.b16 %v890
  %v963 = vunpack.c.l.b16 %v891
  %v964 = vunpack.c.l.b16 %v892
  %v965 = vunpack.c.l.b16 %v893
  %v966 = vunpack.c.l.b16 %v894
  %v967 = vunpack.c.l.b16 %v895
  %v968 = vunpack.c.l.b16 %v896
  %v969 = vunpack.c.l.b16 %v897
  %v970 = vunpack.c.l.b16 %v898
  %v971 = vunpack.c.l.b16 %v899
  %v972 = vunpack.c.l.b16 %v900
  %v973 = vunpack.c.l.b16 %v901
  %v974 = vunpack.c.l.b16 %v902
  %v975 = vunpack.c.l.b16 %v903
  %v976 = vunpack.c.l.b16 %v904
  %v977 = vunpack.c.l.b16 %v905
  %v978 = vunpack.c.l.b16 %v906
  %v979 = vunpack.c.l.b16 %v907
  %v980 = vunpack.c.l.b16 %v908
  %v981 = vunpack.c.l.b16 %v909
  %v982 = vunpack.c.l.b16 %v910
  %v983 = vunpack.c.l.b16 %v911
  %v984 = vunpack.c.l.b16 %v912
  %v985 = vunpack.c.l.b16 %v913
  %v986 = vunpack.c.l.b16 %v914
  %v987 = vunpack.c.l.b16 %v915
  %v988 = vunpack.c.l.b16 %v916
  %v989 = vunpack.c.l.b16 %v917
  %v990 = vunpack.c.l.b16 %v918
  %v991 = vunpack.c.l.b16 %v919
  %v992 = vunpack.c.l.b16 %v920
  %v993 = vunpack.c.l.b16 %v921
  %v994 = vunpack.c.l.b16 %v922
  %v995 = vunpack.c.l.b16 %v923
  %v996 = vpack.c.b16 %v961, %v960
  %v997 = vpack.c.b16 %v963, %v962
  %v998 = vpack.c.b16 %v965, %v964
  %v999 = vpack.c.b16 %v967, %v966
  %v1000 = vpack.c.b16 %v969, %v968
  %v1001 = vpack.c.b16 %v971, %v970
  %v1002 = vpack.c.b16 %v973, %v972
  %v1003 = vpack.c.b16 %v975, %v974
  %v1004 = vpack.c.b16 %v977, %v976
  %v1005 = vpack.c.b16 %v979, %v978
  %v1006 = vpack.c.b16 %v981, %v980
  %v1007 = vpack.c.b16 %v983, %v982
  %v1008 = vpack.c.b16 %v985, %v984
  %v1009 = vpack.c.b16 %v987, %v986
  %v1010 = vpack.c.b16 %v989, %v988
  %v1011 = vpack.c.b16 %v991, %v990
  %v1012 = vpack.c.b16 %v993, %v992
  %v1013 = vpack.c.b16 %v995, %v994
  %1032 = vmatpush.bf16.msra.mxu0 %v222
  %1033 = vmatpush.bf16.msra.mxu0 %v221
  %1034 = vmatpush.bf16.msra.mxu0 %v220
  %1035 = vmatpush.bf16.msra.mxu0 %v219
  %1036 = vmatpush.bf16.msra.mxu0 %v218
  %1037 = vmatpush.bf16.msra.mxu0 %v217
  %1038 = vmatpush.bf16.msra.mxu0 %v216
  %1039 = vmatpush.bf16.msra.mxu0 %v215
  %1040 = vmatmul.bf16.gmra.mxu0 %v996
  %v1041 = vpop.f32.mrf.mxu0
  %v1042 = vadd.f32 0.0, %v1041
  %v1043 = vpop.f32.mrf.mxu0
  %v1044 = vadd.f32 0.0, %v1043
  %1045 = vmatmul.bf16.gmra.mxu0 %v997
  %v1046 = vpop.f32.mrf.mxu0
  %v1047 = vadd.f32 0.0, %v1046
  %v1048 = vpop.f32.mrf.mxu0
  %v1049 = vadd.f32 0.0, %v1048
  %1050 = vmatmul.bf16.gmra.mxu0 %v998
  %v1051 = vpop.f32.mrf.mxu0
  %v1052 = vadd.f32 0.0, %v1051
  %v1053 = vpop.f32.mrf.mxu0
  %v1054 = vadd.f32 0.0, %v1053
  %1055 = vmatmul.bf16.gmra.mxu0 %v999
  %v1056 = vpop.f32.mrf.mxu0
  %v1057 = vadd.f32 0.0, %v1056
  %v1058 = vpop.f32.mrf.mxu0
  %v1059 = vadd.f32 0.0, %v1058
  %1060 = vmatmul.bf16.gmra.mxu0 %v1000
  %v1061 = vpop.f32.mrf.mxu0
  %v1062 = vadd.f32 0.0, %v1061
  %v1063 = vpop.f32.mrf.mxu0
  %v1064 = vadd.f32 0.0, %v1063
  %1065 = vmatmul.bf16.gmra.mxu0 %v1001
  %v1066 = vpop.f32.mrf.mxu0
  %v1067 = vadd.f32 0.0, %v1066
  %v1068 = vpop.f32.mrf.mxu0
  %v1069 = vadd.f32 0.0, %v1068
  %1070 = vmatmul.bf16.gmra.mxu0 %v1002
  %v1071 = vpop.f32.mrf.mxu0
  %v1072 = vadd.f32 0.0, %v1071
  %v1073 = vpop.f32.mrf.mxu0
  %v1074 = vadd.f32 0.0, %v1073
  %1075 = vmatmul.bf16.gmra.mxu0 %v1003
  %v1076 = vpop.f32.mrf.mxu0
  %v1077 = vadd.f32 0.0, %v1076
  %v1078 = vpop.f32.mrf.mxu0
  %v1079 = vadd.f32 0.0, %v1078
  %1080 = vmatmul.bf16.gmra.mxu0 %v1004
  %v1081 = vpop.f32.mrf.mxu0
  %v1082 = vadd.f32 0.0, %v1081
  %v1083 = vpop.f32.mrf.mxu0
  %v1084 = vadd.f32 0.0, %v1083
  %1085 = vmatmul.bf16.gmra.mxu0 %v1005
  %v1086 = vpop.f32.mrf.mxu0
  %v1087 = vadd.f32 0.0, %v1086
  %v1088 = vpop.f32.mrf.mxu0
  %v1089 = vadd.f32 0.0, %v1088
  %1090 = vmatmul.bf16.gmra.mxu0 %v1006
  %v1091 = vpop.f32.mrf.mxu0
  %v1092 = vadd.f32 0.0, %v1091
  %v1093 = vpop.f32.mrf.mxu0
  %v1094 = vadd.f32 0.0, %v1093
  %1095 = vmatmul.bf16.gmra.mxu0 %v1007
  %v1096 = vpop.f32.mrf.mxu0
  %v1097 = vadd.f32 0.0, %v1096
  %v1098 = vpop.f32.mrf.mxu0
  %v1099 = vadd.f32 0.0, %v1098
  %1100 = vmatmul.bf16.gmra.mxu0 %v1008
  %v1101 = vpop.f32.mrf.mxu0
  %v1102 = vadd.f32 0.0, %v1101
  %v1103 = vpop.f32.mrf.mxu0
  %v1104 = vadd.f32 0.0, %v1103
  %1105 = vmatmul.bf16.gmra.mxu0 %v1009
  %v1106 = vpop.f32.mrf.mxu0
  %v1107 = vadd.f32 0.0, %v1106
  %v1108 = vpop.f32.mrf.mxu0
  %v1109 = vadd.f32 0.0, %v1108
  %1110 = vmatmul.bf16.gmra.mxu0 %v1010
  %v1111 = vpop.f32.mrf.mxu0
  %v1112 = vadd.f32 0.0, %v1111
  %v1113 = vpop.f32.mrf.mxu0
  %v1114 = vadd.f32 0.0, %v1113
  %1115 = vmatmul.bf16.gmra.mxu0 %v1011
  %v1116 = vpop.f32.mrf.mxu0
  %v1117 = vadd.f32 0.0, %v1116
  %v1118 = vpop.f32.mrf.mxu0
  %v1119 = vadd.f32 0.0, %v1118
  %1120 = vmatmul.bf16.gmra.mxu0 %v1012
  %v1121 = vpop.f32.mrf.mxu0
  %v1122 = vadd.f32 0.0, %v1121
  %v1123 = vpop.f32.mrf.mxu0
  %v1124 = vadd.f32 0.0, %v1123
  %1125 = vmatmul.bf16.gmra.mxu0 %v1013
  %v1126 = vpop.f32.mrf.mxu0
  %v1127 = vadd.f32 0.0, %v1126
  %v1128 = vpop.f32.mrf.mxu0
  %v1129 = vadd.f32 0.0, %v1128
  %1130 = vdwg.mxu0
  %v1131 = vmax.f32 %v852, %v1042
  %v1132 = vmax.f32 %v853, %v1044
  %v1133 = vmax.f32 %v854, %v1047
  %v1134 = vmax.f32 %v855, %v1049
  %v1135 = vmax.f32 %v856, %v1052
  %v1136 = vmax.f32 %v857, %v1054
  %v1137 = vmax.f32 %v858, %v1057
  %v1138 = vmax.f32 %v859, %v1059
  %v1139 = vmax.f32 %v860, %v1062
  %v1140 = vmax.f32 %v861, %v1064
  %v1141 = vmax.f32 %v862, %v1067
  %v1142 = vmax.f32 %v863, %v1069
  %v1143 = vmax.f32 %v864, %v1072
  %v1144 = vmax.f32 %v865, %v1074
  %v1145 = vmax.f32 %v866, %v1077
  %v1146 = vmax.f32 %v867, %v1079
  %v1147 = vmax.f32 %v868, %v1082
  %v1148 = vmax.f32 %v869, %v1084
  %v1149 = vmax.f32 %v870, %v1087
  %v1150 = vmax.f32 %v871, %v1089
  %v1151 = vmax.f32 %v872, %v1092
  %v1152 = vmax.f32 %v873, %v1094
  %v1153 = vmax.f32 %v874, %v1097
  %v1154 = vmax.f32 %v875, %v1099
  %v1155 = vmax.f32 %v876, %v1102
  %v1156 = vmax.f32 %v877, %v1104
  %v1157 = vmax.f32 %v878, %v1107
  %v1158 = vmax.f32 %v879, %v1109
  %v1159 = vmax.f32 %v880, %v1112
  %v1160 = vmax.f32 %v881, %v1114
  %v1161 = vmax.f32 %v882, %v1117
  %v1162 = vmax.f32 %v883, %v1119
  %v1163 = vmax.f32 %v884, %v1122
  %v1164 = vmax.f32 %v885, %v1124
  %v1165 = vmax.f32 %v886, %v1127
  %v1166 = vmax.f32 %v887, %v1129
  %v1167 = vld [vmem:[%s5] sm:$0x1]
  %v1169 = vperm.slane %v1167, 0
  %v1171 = vadd.f32 %v1131, %v1169
  %v1172 = vadd.f32 %v1132, %v1169
  %v1173 = vadd.f32 %v1133, %v1169
  %v1174 = vadd.f32 %v1134, %v1169
  %v1175 = vadd.f32 %v1135, %v1169
  %v1176 = vadd.f32 %v1136, %v1169
  %v1177 = vadd.f32 %v1137, %v1169
  %v1178 = vadd.f32 %v1138, %v1169
  %v1179 = vadd.f32 %v1139, %v1169
  %v1180 = vadd.f32 %v1140, %v1169
  %v1181 = vadd.f32 %v1141, %v1169
  %v1182 = vadd.f32 %v1142, %v1169
  %v1183 = vadd.f32 %v1143, %v1169
  %v1184 = vadd.f32 %v1144, %v1169
  %v1185 = vadd.f32 %v1145, %v1169
  %v1186 = vadd.f32 %v1146, %v1169
  %v1187 = vadd.f32 %v1147, %v1169
  %v1188 = vadd.f32 %v1148, %v1169
  %v1189 = vadd.f32 %v1149, %v1169
  %v1190 = vadd.f32 %v1150, %v1169
  %v1191 = vadd.f32 %v1151, %v1169
  %v1192 = vadd.f32 %v1152, %v1169
  %v1193 = vadd.f32 %v1153, %v1169
  %v1194 = vadd.f32 %v1154, %v1169
  %v1195 = vadd.f32 %v1155, %v1169
  %v1196 = vadd.f32 %v1156, %v1169
  %v1197 = vadd.f32 %v1157, %v1169
  %v1198 = vadd.f32 %v1158, %v1169
  %v1199 = vadd.f32 %v1159, %v1169
  %v1200 = vadd.f32 %v1160, %v1169
  %v1201 = vadd.f32 %v1161, %v1169
  %v1202 = vadd.f32 %v1162, %v1169
  %v1203 = vadd.f32 %v1163, %v1169
  %v1204 = vadd.f32 %v1164, %v1169
  %v1205 = vadd.f32 %v1165, %v1169
  %v1206 = vadd.f32 %v1166, %v1169
  %v1207 = vmax.f32 %v1171, 0.0
  %v1208 = vmax.f32 %v1172, 0.0
  %v1209 = vmax.f32 %v1173, 0.0
  %v1210 = vmax.f32 %v1174, 0.0
  %v1211 = vmax.f32 %v1175, 0.0
  %v1212 = vmax.f32 %v1176, 0.0
  %v1213 = vmax.f32 %v1177, 0.0
  %v1214 = vmax.f32 %v1178, 0.0
  %v1215 = vmax.f32 %v1179, 0.0
  %v1216 = vmax.f32 %v1180, 0.0
  %v1217 = vmax.f32 %v1181, 0.0
  %v1218 = vmax.f32 %v1182, 0.0
  %v1219 = vmax.f32 %v1183, 0.0
  %v1220 = vmax.f32 %v1184, 0.0
  %v1221 = vmax.f32 %v1185, 0.0
  %v1222 = vmax.f32 %v1186, 0.0
  %v1223 = vmax.f32 %v1187, 0.0
  %v1224 = vmax.f32 %v1188, 0.0
  %v1225 = vmax.f32 %v1189, 0.0
  %v1226 = vmax.f32 %v1190, 0.0
  %v1227 = vmax.f32 %v1191, 0.0
  %v1228 = vmax.f32 %v1192, 0.0
  %v1229 = vmax.f32 %v1193, 0.0
  %v1230 = vmax.f32 %v1194, 0.0
  %v1231 = vmax.f32 %v1195, 0.0
  %v1232 = vmax.f32 %v1196, 0.0
  %v1233 = vmax.f32 %v1197, 0.0
  %v1234 = vmax.f32 %v1198, 0.0
  %v1235 = vmax.f32 %v1199, 0.0
  %v1236 = vmax.f32 %v1200, 0.0
  %v1237 = vmax.f32 %v1201, 0.0
  %v1238 = vmax.f32 %v1202, 0.0
  %v1239 = vmax.f32 %v1203, 0.0
  %v1240 = vmax.f32 %v1204, 0.0
  %v1241 = vmax.f32 %v1205, 0.0
  %v1242 = vmax.f32 %v1206, 0.0
  %vm1243 = vcmask 64512
  %1244 = vst.msk [vmem:[%s6] sm:$0xff] %vm1243, %v1207
  %1245 = vst.msk [vmem:[%s6 + $0x8] sm:$0xff] %vm1243, %v1208
  %1246 = vst.msk [vmem:[%s6 + $0x10] sm:$0xff] %vm1243, %v1209
  %1247 = vst.msk [vmem:[%s6 + $0x18] sm:$0xff] %vm1243, %v1210
  %1248 = vst.msk [vmem:[%s6 + $0x20] sm:$0xff] %vm1243, %v1211
  %1249 = vst.msk [vmem:[%s6 + $0x28] sm:$0xff] %vm1243, %v1212
  %1250 = vst.msk [vmem:[%s6 + $0x30] sm:$0xff] %vm1243, %v1213
  %1251 = vst.msk [vmem:[%s6 + $0x38] sm:$0xff] %vm1243, %v1214
  %1252 = vst.msk [vmem:[%s6 + $0x40] sm:$0xff] %vm1243, %v1215
  %1253 = vst.msk [vmem:[%s6 + $0x48] sm:$0xff] %vm1243, %v1216
  %1254 = vst.msk [vmem:[%s6 + $0x50] sm:$0xff] %vm1243, %v1217
  %1255 = vst.msk [vmem:[%s6 + $0x58] sm:$0xff] %vm1243, %v1218
  %1256 = vst.msk [vmem:[%s6 + $0x60] sm:$0xff] %vm1243, %v1219
  %1257 = vst.msk [vmem:[%s6 + $0x68] sm:$0xff] %vm1243, %v1220
  %1258 = vst.msk [vmem:[%s6 + $0x70] sm:$0xff] %vm1243, %v1221
  %1259 = vst.msk [vmem:[%s6 + $0x78] sm:$0xff] %vm1243, %v1222
  %1260 = vst.msk [vmem:[%s6 + $0x80] sm:$0xff] %vm1243, %v1223
  %1261 = vst.msk [vmem:[%s6 + $0x88] sm:$0xff] %vm1243, %v1224
  %1262 = vst.msk [vmem:[%s6 + $0x90] sm:$0xff] %vm1243, %v1225
  %1263 = vst.msk [vmem:[%s6 + $0x98] sm:$0xff] %vm1243, %v1226
  %1264 = vst.msk [vmem:[%s6 + $0xa0] sm:$0xff] %vm1243, %v1227
  %1265 = vst.msk [vmem:[%s6 + $0xa8] sm:$0xff] %vm1243, %v1228
  %1266 = vst.msk [vmem:[%s6 + $0xb0] sm:$0xff] %vm1243, %v1229
  %1267 = vst.msk [vmem:[%s6 + $0xb8] sm:$0xff] %vm1243, %v1230
  %1268 = vst.msk [vmem:[%s6 + $0xc0] sm:$0xff] %vm1243, %v1231
  %1269 = vst.msk [vmem:[%s6 + $0xc8] sm:$0xff] %vm1243, %v1232
  %1270 = vst.msk [vmem:[%s6 + $0xd0] sm:$0xff] %vm1243, %v1233
  %1271 = vst.msk [vmem:[%s6 + $0xd8] sm:$0xff] %vm1243, %v1234
  %1272 = vst.msk [vmem:[%s6 + $0xe0] sm:$0xff] %vm1243, %v1235
  %1273 = vst.msk [vmem:[%s6 + $0xe8] sm:$0xff] %vm1243, %v1236
  %1274 = vst.msk [vmem:[%s6 + $0xf0] sm:$0xff] %vm1243, %v1237
  %1275 = vst.msk [vmem:[%s6 + $0xf8] sm:$0xff] %vm1243, %v1238
  %1276 = vst.msk [vmem:[%s6 + $0x100] sm:$0xff] %vm1243, %v1239
  %1277 = vst.msk [vmem:[%s6 + $0x108] sm:$0xff] %vm1243, %v1240
  %1278 = vst.msk [vmem:[%s6 + $0x110] sm:$0xff] %vm1243, %v1241
  %1279 = vst.msk [vmem:[%s6 + $0x118] sm:$0xff] %vm1243, %v1242
  // Predicated region
  $region26: #{convnet_forward.3} parent=0 // pred_check
    _
  $region27: #{convnet_forward.3} parent=0 // pred_check_branch
    %1281 = sbr.rel (0) target = $region29
  $region28: #{convnet_forward.3} parent=0 // pred_region
    _
  $region29: #{convnet_forward.3} parent=0 // pred_fallthru
    _
  // Predicated region
  $region30: #{convnet_forward.3} parent=0 // pred_check
    _
  $region31: #{convnet_forward.3} parent=0 // pred_check_branch
    %1283 = sbr.rel (0) target = $region33
  $region32: #{convnet_forward.3} parent=0 // pred_region
    _
  $region33: #{convnet_forward.3} parent=0 // pred_fallthru
    _

// kernel: convnet_forward.5
$region0: #{convnet_forward.5}
  #allocation0 [shape = 'u32[]', space=smem, size = 0x4, offset = 0x4, fixed_abs, tag = 'smem constant byte address 0x4 - core index']
  #allocation1 [shape = 'u32[72,128]{1,0:T(1,128)}', space=vmem, size = 0x9000, scoped, tag = 'internal scratch']
  %s0 = inlined_call_operand.vmem [shape: bf16[8,256], index: 0, kind: input, shape index: {}]
  %s1 = inlined_call_operand.vmem [shape: bf16[256,128], index: 1, kind: input, shape index: {}]
  %s2 = inlined_call_operand.vmem [shape: f32[1,128], index: 2, kind: input, shape index: {}]
  %s3 = inlined_call_operand.vmem [shape: bf16[128,128], index: 3, kind: input, shape index: {}]
  %s4 = inlined_call_operand.vmem [shape: f32[1,128], index: 4, kind: input, shape index: {}]
  %s5 = inlined_call_operand.vmem [shape: bf16[128,10], index: 5, kind: input, shape index: {}]
  %s6 = inlined_call_operand.vmem [shape: f32[1,10], index: 6, kind: input, shape index: {}]
  %s7 = inlined_call_operand.vmem [shape: f32[8,10], index: 7, kind: output, shape index: {}]
  %s8 = sld [smem:[#allocation0]]
  $region38: #{convnet_forward.5} parent=0
    _
  %s10 = ssub.s32 1, %s8
  %s11 = scalar_select 0, %s10, %s8
  // Predicated region
  $region2: #{convnet_forward.5} parent=0 // pred_check
    _
  $region3: #{convnet_forward.5} parent=0 // pred_check_branch
    %13 = sbr.rel (0) target = $region5
  $region4: #{convnet_forward.5} parent=0 // pred_region
    _
  $region5: #{convnet_forward.5} parent=0 // pred_fallthru
    _
  // Predicated region
  $region6: #{convnet_forward.5} parent=0 // pred_check
    _
  $region7: #{convnet_forward.5} parent=0 // pred_check_branch
    %15 = sbr.rel (0) target = $region9
  $region8: #{convnet_forward.5} parent=0 // pred_region
    _
  $region9: #{convnet_forward.5} parent=0 // pred_fallthru
    _
  // Predicated region
  $region10: #{convnet_forward.5} parent=0 // pred_check
    _
  $region11: #{convnet_forward.5} parent=0 // pred_check_branch
    %17 = sbr.rel (0) target = $region13
  $region12: #{convnet_forward.5} parent=0 // pred_region
    _
  $region13: #{convnet_forward.5} parent=0 // pred_fallthru
    _
  // Predicated region
  $region14: #{convnet_forward.5} parent=0 // pred_check
    _
  $region15: #{convnet_forward.5} parent=0 // pred_check_branch
    %19 = sbr.rel (0) target = $region17
  $region16: #{convnet_forward.5} parent=0 // pred_region
    _
  $region17: #{convnet_forward.5} parent=0 // pred_fallthru
    _
  // Predicated region
  $region18: #{convnet_forward.5} parent=0 // pred_check
    _
  $region19: #{convnet_forward.5} parent=0 // pred_check_branch
    %21 = sbr.rel (0) target = $region21
  $region20: #{convnet_forward.5} parent=0 // pred_region
    _
  $region21: #{convnet_forward.5} parent=0 // pred_fallthru
    _
  // Predicated region
  $region22: #{convnet_forward.5} parent=0 // pred_check
    _
  $region23: #{convnet_forward.5} parent=0 // pred_check_branch
    %23 = sbr.rel (0) target = $region25
  $region24: #{convnet_forward.5} parent=0 // pred_region
    _
  $region25: #{convnet_forward.5} parent=0 // pred_fallthru
    _
  // Predicated region
  $region26: #{convnet_forward.5} parent=0 // pred_check
    _
  $region27: #{convnet_forward.5} parent=0 // pred_check_branch
    %25 = sbr.rel (0) target = $region29
  $region28: #{convnet_forward.5} parent=0 // pred_region
    _
  $region29: #{convnet_forward.5} parent=0 // pred_fallthru
    _
  %v26 = vld [vmem:[%s0] sm:$0xff]
  %v27 = vld [vmem:[%s1] sm:$0xf]
  %v28 = vld [vmem:[%s1 + $0x4] sm:$0xf]
  %v29 = vld [vmem:[%s1 + $0x8] sm:$0xf]
  %v30 = vld [vmem:[%s1 + $0xc] sm:$0xf]
  %v31 = vld [vmem:[%s1 + $0x10] sm:$0xf]
  %v32 = vld [vmem:[%s1 + $0x14] sm:$0xf]
  %v33 = vld [vmem:[%s1 + $0x18] sm:$0xf]
  %v34 = vld [vmem:[%s1 + $0x1c] sm:$0xf]
  %v35 = vld [vmem:[%s1 + $0x20] sm:$0xf]
  %v36 = vld [vmem:[%s1 + $0x24] sm:$0xf]
  %v37 = vld [vmem:[%s1 + $0x28] sm:$0xf]
  %v38 = vld [vmem:[%s1 + $0x2c] sm:$0xf]
  %v39 = vld [vmem:[%s1 + $0x30] sm:$0xf]
  %v40 = vld [vmem:[%s1 + $0x34] sm:$0xf]
  %v41 = vld [vmem:[%s1 + $0x38] sm:$0xf]
  %v42 = vld [vmem:[%s1 + $0x3c] sm:$0xf]
  %v43 = vld [vmem:[%s1 + $0x40] sm:$0xf]
  %v44 = vld [vmem:[%s1 + $0x44] sm:$0xf]
  %v45 = vld [vmem:[%s1 + $0x48] sm:$0xf]
  %v46 = vld [vmem:[%s1 + $0x4c] sm:$0xf]
  %v47 = vld [vmem:[%s1 + $0x50] sm:$0xf]
  %v48 = vld [vmem:[%s1 + $0x54] sm:$0xf]
  %v49 = vld [vmem:[%s1 + $0x58] sm:$0xf]
  %v50 = vld [vmem:[%s1 + $0x5c] sm:$0xf]
  %v51 = vld [vmem:[%s1 + $0x60] sm:$0xf]
  %v52 = vld [vmem:[%s1 + $0x64] sm:$0xf]
  %v53 = vld [vmem:[%s1 + $0x68] sm:$0xf]
  %v54 = vld [vmem:[%s1 + $0x6c] sm:$0xf]
  %v55 = vld [vmem:[%s1 + $0x70] sm:$0xf]
  %v56 = vld [vmem:[%s1 + $0x74] sm:$0xf]
  %v57 = vld [vmem:[%s1 + $0x78] sm:$0xf]
  %v58 = vld [vmem:[%s1 + $0x7c] sm:$0xf]
  %v59 = vld [vmem:[%s2] sm:$0x1]
  %v61 = vperm.slane %v59, 0
  %v64 = vunpack.c.l.b16 %v26
  %v65 = vunpack.c.h.b16 %v26
  %v66 = vpack.c.b16 %v64, %v64
  %v67 = vpack.c.b16 %v65, %v65
  %v102 = vunpack.c.l.b16 %v27
  %v103 = vunpack.c.l.b16 %v28
  %v104 = vunpack.c.l.b16 %v29
  %v105 = vunpack.c.l.b16 %v30
  %v106 = vunpack.c.l.b16 %v31
  %v107 = vunpack.c.l.b16 %v32
  %v108 = vunpack.c.l.b16 %v33
  %v109 = vunpack.c.l.b16 %v34
  %v110 = vunpack.c.l.b16 %v35
  %v111 = vunpack.c.l.b16 %v36
  %v112 = vunpack.c.l.b16 %v37
  %v113 = vunpack.c.l.b16 %v38
  %v114 = vunpack.c.l.b16 %v39
  %v115 = vunpack.c.l.b16 %v40
  %v116 = vunpack.c.l.b16 %v41
  %v117 = vunpack.c.l.b16 %v42
  %v118 = vunpack.c.l.b16 %v43
  %v119 = vunpack.c.l.b16 %v44
  %v120 = vunpack.c.l.b16 %v45
  %v121 = vunpack.c.l.b16 %v46
  %v122 = vunpack.c.l.b16 %v47
  %v123 = vunpack.c.l.b16 %v48
  %v124 = vunpack.c.l.b16 %v49
  %v125 = vunpack.c.l.b16 %v50
  %v126 = vunpack.c.l.b16 %v51
  %v127 = vunpack.c.l.b16 %v52
  %v128 = vunpack.c.l.b16 %v53
  %v129 = vunpack.c.l.b16 %v54
  %v130 = vunpack.c.l.b16 %v55
  %v131 = vunpack.c.l.b16 %v56
  %v132 = vunpack.c.l.b16 %v57
  %v133 = vunpack.c.l.b16 %v58
  %v134 = vpack.c.b16 %v103, %v102
  %v135 = vpack.c.b16 %v105, %v104
  %v136 = vpack.c.b16 %v107, %v106
  %v137 = vpack.c.b16 %v109, %v108
  %v138 = vpack.c.b16 %v111, %v110
  %v139 = vpack.c.b16 %v113, %v112
  %v140 = vpack.c.b16 %v115, %v114
  %v141 = vpack.c.b16 %v117, %v116
  %v142 = vpack.c.b16 %v119, %v118
  %v143 = vpack.c.b16 %v121, %v120
  %v144 = vpack.c.b16 %v123, %v122
  %v145 = vpack.c.b16 %v125, %v124
  %v146 = vpack.c.b16 %v127, %v126
  %v147 = vpack.c.b16 %v129, %v128
  %v148 = vpack.c.b16 %v131, %v130
  %v149 = vpack.c.b16 %v133, %v132
  %166 = vmatpush.bf16.msra.mxu0 %v141
  %167 = vmatpush.bf16.msra.mxu0 %v140
  %168 = vmatpush.bf16.msra.mxu0 %v139
  %169 = vmatpush.bf16.msra.mxu0 %v138
  %170 = vmatpush.bf16.msra.mxu0 %v137
  %171 = vmatpush.bf16.msra.mxu0 %v136
  %172 = vmatpush.bf16.msra.mxu0 %v135
  %173 = vmatpush.bf16.msra.mxu0 %v134
  %174 = vmatmul.bf16.gmra.mxu0 %v66
  %v175 = vpop.f32.mrf.mxu0
  %v176 = vadd.f32 %v61, %v175
  %v177 = vpop.f32.mrf.mxu0
  %178 = vdwg.mxu0
  %179 = vmatpush.bf16.msra.mxu0 %v149
  %180 = vmatpush.bf16.msra.mxu0 %v148
  %181 = vmatpush.bf16.msra.mxu0 %v147
  %182 = vmatpush.bf16.msra.mxu0 %v146
  %183 = vmatpush.bf16.msra.mxu0 %v145
  %184 = vmatpush.bf16.msra.mxu0 %v144
  %185 = vmatpush.bf16.msra.mxu0 %v143
  %186 = vmatpush.bf16.msra.mxu0 %v142
  %187 = vmatmul.bf16.gmra.mxu0 %v67
  %v188 = vpop.f32.mrf.mxu0
  %v189 = vadd.f32 %v176, %v188
  %v190 = vpop.f32.mrf.mxu0
  %191 = vdwg.mxu0
  %v192 = vmax.f32 %v189, 0.0
  %v193 = vpack.c.bf16 %v192, %v192
  %v194 = vld [vmem:[%s3] sm:$0xf]
  %v195 = vld [vmem:[%s3 + $0x4] sm:$0xf]
  %v196 = vld [vmem:[%s3 + $0x8] sm:$0xf]
  %v197 = vld [vmem:[%s3 + $0xc] sm:$0xf]
  %v198 = vld [vmem:[%s3 + $0x10] sm:$0xf]
  %v199 = vld [vmem:[%s3 + $0x14] sm:$0xf]
  %v200 = vld [vmem:[%s3 + $0x18] sm:$0xf]
  %v201 = vld [vmem:[%s3 + $0x1c] sm:$0xf]
  %v202 = vld [vmem:[%s3 + $0x20] sm:$0xf]
  %v203 = vld [vmem:[%s3 + $0x24] sm:$0xf]
  %v204 = vld [vmem:[%s3 + $0x28] sm:$0xf]
  %v205 = vld [vmem:[%s3 + $0x2c] sm:$0xf]
  %v206 = vld [vmem:[%s3 + $0x30] sm:$0xf]
  %v207 = vld [vmem:[%s3 + $0x34] sm:$0xf]
  %v208 = vld [vmem:[%s3 + $0x38] sm:$0xf]
  %v209 = vld [vmem:[%s3 + $0x3c] sm:$0xf]
  %v210 = vld [vmem:[%s4] sm:$0x1]
  %v212 = vperm.slane %v210, 0
  %v230 = vunpack.c.l.b16 %v194
  %v231 = vunpack.c.l.b16 %v195
  %v232 = vunpack.c.l.b16 %v196
  %v233 = vunpack.c.l.b16 %v197
  %v234 = vunpack.c.l.b16 %v198
  %v235 = vunpack.c.l.b16 %v199
  %v236 = vunpack.c.l.b16 %v200
  %v237 = vunpack.c.l.b16 %v201
  %v238 = vunpack.c.l.b16 %v202
  %v239 = vunpack.c.l.b16 %v203
  %v240 = vunpack.c.l.b16 %v204
  %v241 = vunpack.c.l.b16 %v205
  %v242 = vunpack.c.l.b16 %v206
  %v243 = vunpack.c.l.b16 %v207
  %v244 = vunpack.c.l.b16 %v208
  %v245 = vunpack.c.l.b16 %v209
  %v246 = vpack.c.b16 %v231, %v230
  %v247 = vpack.c.b16 %v233, %v232
  %v248 = vpack.c.b16 %v235, %v234
  %v249 = vpack.c.b16 %v237, %v236
  %v250 = vpack.c.b16 %v239, %v238
  %v251 = vpack.c.b16 %v241, %v240
  %v252 = vpack.c.b16 %v243, %v242
  %v253 = vpack.c.b16 %v245, %v244
  %262 = vmatpush.bf16.msra.mxu0 %v253
  %263 = vmatpush.bf16.msra.mxu0 %v252
  %264 = vmatpush.bf16.msra.mxu0 %v251
  %265 = vmatpush.bf16.msra.mxu0 %v250
  %266 = vmatpush.bf16.msra.mxu0 %v249
  %267 = vmatpush.bf16.msra.mxu0 %v248
  %268 = vmatpush.bf16.msra.mxu0 %v247
  %269 = vmatpush.bf16.msra.mxu0 %v246
  %270 = vmatmul.bf16.gmra.mxu0 %v193
  %v271 = vpop.f32.mrf.mxu0
  %v272 = vadd.f32 %v212, %v271
  %v273 = vpop.f32.mrf.mxu0
  %274 = vdwg.mxu0
  %v275 = vmax.f32 %v272, 0.0
  %v276 = vpack.c.bf16 %v275, %v275
  %v277 = vld [vmem:[%s5] sm:$0xf]
  %v278 = vld [vmem:[%s5 + $0x4] sm:$0xf]
  %v279 = vld [vmem:[%s5 + $0x8] sm:$0xf]
  %v280 = vld [vmem:[%s5 + $0xc] sm:$0xf]
  %v281 = vld [vmem:[%s5 + $0x10] sm:$0xf]
  %v282 = vld [vmem:[%s5 + $0x14] sm:$0xf]
  %v283 = vld [vmem:[%s5 + $0x18] sm:$0xf]
  %v284 = vld [vmem:[%s5 + $0x1c] sm:$0xf]
  %v285 = vld [vmem:[%s5 + $0x20] sm:$0xf]
  %v286 = vld [vmem:[%s5 + $0x24] sm:$0xf]
  %v287 = vld [vmem:[%s5 + $0x28] sm:$0xf]
  %v288 = vld [vmem:[%s5 + $0x2c] sm:$0xf]
  %v289 = vld [vmem:[%s5 + $0x30] sm:$0xf]
  %v290 = vld [vmem:[%s5 + $0x34] sm:$0xf]
  %v291 = vld [vmem:[%s5 + $0x38] sm:$0xf]
  %v292 = vld [vmem:[%s5 + $0x3c] sm:$0xf]
  %v293 = vld [vmem:[%s6] sm:$0x1]
  %v295 = vperm.slane %v293, 0
  %v313 = vunpack.c.l.b16 %v277
  %v314 = vunpack.c.l.b16 %v278
  %v315 = vunpack.c.l.b16 %v279
  %v316 = vunpack.c.l.b16 %v280
  %v317 = vunpack.c.l.b16 %v281
  %v318 = vunpack.c.l.b16 %v282
  %v319 = vunpack.c.l.b16 %v283
  %v320 = vunpack.c.l.b16 %v284
  %v321 = vunpack.c.l.b16 %v285
  %v322 = vunpack.c.l.b16 %v286
  %v323 = vunpack.c.l.b16 %v287
  %v324 = vunpack.c.l.b16 %v288
  %v325 = vunpack.c.l.b16 %v289
  %v326 = vunpack.c.l.b16 %v290
  %v327 = vunpack.c.l.b16 %v291
  %v328 = vunpack.c.l.b16 %v292
  %v329 = vpack.c.b16 %v314, %v313
  %v330 = vpack.c.b16 %v316, %v315
  %v331 = vpack.c.b16 %v318, %v317
  %v332 = vpack.c.b16 %v320, %v319
  %v333 = vpack.c.b16 %v322, %v321
  %v334 = vpack.c.b16 %v324, %v323
  %v335 = vpack.c.b16 %v326, %v325
  %v336 = vpack.c.b16 %v328, %v327
  %345 = vmatpush.bf16.msra.mxu0 %v336
  %346 = vmatpush.bf16.msra.mxu0 %v335
  %347 = vmatpush.bf16.msra.mxu0 %v334
  %348 = vmatpush.bf16.msra.mxu0 %v333
  %349 = vmatpush.bf16.msra.mxu0 %v332
  %350 = vmatpush.bf16.msra.mxu0 %v331
  %351 = vmatpush.bf16.msra.mxu0 %v330
  %352 = vmatpush.bf16.msra.mxu0 %v329
  %353 = vmatmul.bf16.gmra.mxu0 %v276
  %v354 = vpop.f32.mrf.mxu0
  %v355 = vadd.f32 %v295, %v354
  %v356 = vpop.f32.mrf.mxu0
  %357 = vdwg.mxu0
  %vm358 = vcmask 80896
  %359 = vst.msk [vmem:[%s7] sm:$0xff] %vm358, %v355
  // Predicated region
  $region30: #{convnet_forward.5} parent=0 // pred_check
    _
  $region31: #{convnet_forward.5} parent=0 // pred_check_branch
    %361 = sbr.rel (0) target = $region33
  $region32: #{convnet_forward.5} parent=0 // pred_region
    _
  $region33: #{convnet_forward.5} parent=0 // pred_fallthru
    _
  // Predicated region
  $region34: #{convnet_forward.5} parent=0 // pred_check
    _
  $region35: #{convnet_forward.5} parent=0 // pred_check_branch
    %363 = sbr.rel (0) target = $region37
  $region36: #{convnet_forward.5} parent=0 // pred_region
    _
  $region37: #{convnet_forward.5} parent=0 // pred_fallthru
    _

// kernel: convnet_forward.4
$region0: #{convnet_forward.4}
  #allocation0 [shape = 'u32[]', space=smem, size = 0x4, offset = 0x4, fixed_abs, tag = 'smem constant byte address 0x4 - core index']
  #allocation1 [shape = 'u32[72,128]{1,0:T(1,128)}', space=vmem, size = 0x9000, scoped, tag = 'internal scratch']
  %s0 = inlined_call_operand.vmem [shape: bf16[32,256], index: 0, kind: input, shape index: {}]
  %s1 = inlined_call_operand.vmem [shape: bf16[32,256], index: 1, kind: input, shape index: {}]
  %s2 = inlined_call_operand.vmem [shape: bf16[32,256], index: 2, kind: input, shape index: {}]
  %s3 = inlined_call_operand.vmem [shape: bf16[32,256], index: 3, kind: input, shape index: {}]
  %s4 = inlined_call_operand.vmem [shape: bf16[256,16], index: 4, kind: input, shape index: {}]
  %s5 = inlined_call_operand.vmem [shape: f32[1,16], index: 5, kind: input, shape index: {}]
  %s6 = inlined_call_operand.vmem [shape: f32[32,16], index: 6, kind: output, shape index: {}]
  %s7 = sld [smem:[#allocation0]]
  $region34: #{convnet_forward.4} parent=0
    _
  %s9 = ssub.s32 1, %s7
  %s10 = scalar_select 0, %s9, %s7
  // Predicated region
  $region2: #{convnet_forward.4} parent=0 // pred_check
    _
  $region3: #{convnet_forward.4} parent=0 // pred_check_branch
    %12 = sbr.rel (0) target = $region5
  $region4: #{convnet_forward.4} parent=0 // pred_region
    _
  $region5: #{convnet_forward.4} parent=0 // pred_fallthru
    _
  // Predicated region
  $region6: #{convnet_forward.4} parent=0 // pred_check
    _
  $region7: #{convnet_forward.4} parent=0 // pred_check_branch
    %14 = sbr.rel (0) target = $region9
  $region8: #{convnet_forward.4} parent=0 // pred_region
    _
  $region9: #{convnet_forward.4} parent=0 // pred_fallthru
    _
  // Predicated region
  $region10: #{convnet_forward.4} parent=0 // pred_check
    _
  $region11: #{convnet_forward.4} parent=0 // pred_check_branch
    %16 = sbr.rel (0) target = $region13
  $region12: #{convnet_forward.4} parent=0 // pred_region
    _
  $region13: #{convnet_forward.4} parent=0 // pred_fallthru
    _
  // Predicated region
  $region14: #{convnet_forward.4} parent=0 // pred_check
    _
  $region15: #{convnet_forward.4} parent=0 // pred_check_branch
    %18 = sbr.rel (0) target = $region17
  $region16: #{convnet_forward.4} parent=0 // pred_region
    _
  $region17: #{convnet_forward.4} parent=0 // pred_fallthru
    _
  // Predicated region
  $region18: #{convnet_forward.4} parent=0 // pred_check
    _
  $region19: #{convnet_forward.4} parent=0 // pred_check_branch
    %20 = sbr.rel (0) target = $region21
  $region20: #{convnet_forward.4} parent=0 // pred_region
    _
  $region21: #{convnet_forward.4} parent=0 // pred_fallthru
    _
  // Predicated region
  $region22: #{convnet_forward.4} parent=0 // pred_check
    _
  $region23: #{convnet_forward.4} parent=0 // pred_check_branch
    %22 = sbr.rel (0) target = $region25
  $region24: #{convnet_forward.4} parent=0 // pred_region
    _
  $region25: #{convnet_forward.4} parent=0 // pred_fallthru
    _
  %v23 = vld [vmem:[%s4] sm:$0xf]
  %v24 = vld [vmem:[%s4 + $0x4] sm:$0xf]
  %v25 = vld [vmem:[%s4 + $0x8] sm:$0xf]
  %v26 = vld [vmem:[%s4 + $0xc] sm:$0xf]
  %v27 = vld [vmem:[%s4 + $0x10] sm:$0xf]
  %v28 = vld [vmem:[%s4 + $0x14] sm:$0xf]
  %v29 = vld [vmem:[%s4 + $0x18] sm:$0xf]
  %v30 = vld [vmem:[%s4 + $0x1c] sm:$0xf]
  %v31 = vld [vmem:[%s4 + $0x20] sm:$0xf]
  %v32 = vld [vmem:[%s4 + $0x24] sm:$0xf]
  %v33 = vld [vmem:[%s4 + $0x28] sm:$0xf]
  %v34 = vld [vmem:[%s4 + $0x2c] sm:$0xf]
  %v35 = vld [vmem:[%s4 + $0x30] sm:$0xf]
  %v36 = vld [vmem:[%s4 + $0x34] sm:$0xf]
  %v37 = vld [vmem:[%s4 + $0x38] sm:$0xf]
  %v38 = vld [vmem:[%s4 + $0x3c] sm:$0xf]
  %v39 = vld [vmem:[%s4 + $0x40] sm:$0xf]
  %v40 = vld [vmem:[%s4 + $0x44] sm:$0xf]
  %v41 = vld [vmem:[%s4 + $0x48] sm:$0xf]
  %v42 = vld [vmem:[%s4 + $0x4c] sm:$0xf]
  %v43 = vld [vmem:[%s4 + $0x50] sm:$0xf]
  %v44 = vld [vmem:[%s4 + $0x54] sm:$0xf]
  %v45 = vld [vmem:[%s4 + $0x58] sm:$0xf]
  %v46 = vld [vmem:[%s4 + $0x5c] sm:$0xf]
  %v47 = vld [vmem:[%s4 + $0x60] sm:$0xf]
  %v48 = vld [vmem:[%s4 + $0x64] sm:$0xf]
  %v49 = vld [vmem:[%s4 + $0x68] sm:$0xf]
  %v50 = vld [vmem:[%s4 + $0x6c] sm:$0xf]
  %v51 = vld [vmem:[%s4 + $0x70] sm:$0xf]
  %v52 = vld [vmem:[%s4 + $0x74] sm:$0xf]
  %v53 = vld [vmem:[%s4 + $0x78] sm:$0xf]
  %v54 = vld [vmem:[%s4 + $0x7c] sm:$0xf]
  %v55 = vld [vmem:[%s0] sm:$0xff]
  %v56 = vld [vmem:[%s0 + $0x8] sm:$0xff]
  %v57 = vld [vmem:[%s0 + $0x10] sm:$0xff]
  %v58 = vld [vmem:[%s0 + $0x18] sm:$0xff]
  %v63 = vunpack.c.l.b16 %v55
  %v64 = vunpack.c.h.b16 %v55
  %v65 = vunpack.c.l.b16 %v56
  %v66 = vunpack.c.h.b16 %v56
  %v67 = vunpack.c.l.b16 %v57
  %v68 = vunpack.c.h.b16 %v57
  %v69 = vunpack.c.l.b16 %v58
  %v70 = vunpack.c.h.b16 %v58
  %v71 = vpack.c.b16 %v65, %v63
  %v72 = vpack.c.b16 %v66, %v64
  %v73 = vpack.c.b16 %v69, %v67
  %v74 = vpack.c.b16 %v70, %v68
  %v111 = vunpack.c.l.b16 %v23
  %v112 = vunpack.c.l.b16 %v24
  %v113 = vunpack.c.l.b16 %v25
  %v114 = vunpack.c.l.b16 %v26
  %v115 = vunpack.c.l.b16 %v27
  %v116 = vunpack.c.l.b16 %v28
  %v117 = vunpack.c.l.b16 %v29
  %v118 = vunpack.c.l.b16 %v30
  %v119 = vunpack.c.l.b16 %v31
  %v120 = vunpack.c.l.b16 %v32
  %v121 = vunpack.c.l.b16 %v33
  %v122 = vunpack.c.l.b16 %v34
  %v123 = vunpack.c.l.b16 %v35
  %v124 = vunpack.c.l.b16 %v36
  %v125 = vunpack.c.l.b16 %v37
  %v126 = vunpack.c.l.b16 %v38
  %v127 = vunpack.c.l.b16 %v39
  %v128 = vunpack.c.l.b16 %v40
  %v129 = vunpack.c.l.b16 %v41
  %v130 = vunpack.c.l.b16 %v42
  %v131 = vunpack.c.l.b16 %v43
  %v132 = vunpack.c.l.b16 %v44
  %v133 = vunpack.c.l.b16 %v45
  %v134 = vunpack.c.l.b16 %v46
  %v135 = vunpack.c.l.b16 %v47
  %v136 = vunpack.c.l.b16 %v48
  %v137 = vunpack.c.l.b16 %v49
  %v138 = vunpack.c.l.b16 %v50
  %v139 = vunpack.c.l.b16 %v51
  %v140 = vunpack.c.l.b16 %v52
  %v141 = vunpack.c.l.b16 %v53
  %v142 = vunpack.c.l.b16 %v54
  %v143 = vpack.c.b16 %v112, %v111
  %v144 = vpack.c.b16 %v114, %v113
  %v145 = vpack.c.b16 %v116, %v115
  %v146 = vpack.c.b16 %v118, %v117
  %v147 = vpack.c.b16 %v120, %v119
  %v148 = vpack.c.b16 %v122, %v121
  %v149 = vpack.c.b16 %v124, %v123
  %v150 = vpack.c.b16 %v126, %v125
  %v151 = vpack.c.b16 %v128, %v127
  %v152 = vpack.c.b16 %v130, %v129
  %v153 = vpack.c.b16 %v132, %v131
  %v154 = vpack.c.b16 %v134, %v133
  %v155 = vpack.c.b16 %v136, %v135
  %v156 = vpack.c.b16 %v138, %v137
  %v157 = vpack.c.b16 %v140, %v139
  %v158 = vpack.c.b16 %v142, %v141
  %175 = vmatpush.bf16.msra.mxu0 %v150
  %176 = vmatpush.bf16.msra.mxu0 %v149
  %177 = vmatpush.bf16.msra.mxu0 %v148
  %178 = vmatpush.bf16.msra.mxu0 %v147
  %179 = vmatpush.bf16.msra.mxu0 %v146
  %180 = vmatpush.bf16.msra.mxu0 %v145
  %181 = vmatpush.bf16.msra.mxu0 %v144
  %182 = vmatpush.bf16.msra.mxu0 %v143
  %183 = vmatmul.bf16.gmra.mxu0 %v71
  %v184 = vpop.f32.mrf.mxu0
  %v185 = vadd.f32 0.0, %v184
  %v186 = vpop.f32.mrf.mxu0
  %v187 = vadd.f32 0.0, %v186
  %188 = vmatmul.bf16.gmra.mxu0 %v73
  %v189 = vpop.f32.mrf.mxu0
  %v190 = vadd.f32 0.0, %v189
  %v191 = vpop.f32.mrf.mxu0
  %v192 = vadd.f32 0.0, %v191
  %193 = vdwg.mxu0
  %194 = vmatpush.bf16.msra.mxu0 %v158
  %195 = vmatpush.bf16.msra.mxu0 %v157
  %196 = vmatpush.bf16.msra.mxu0 %v156
  %197 = vmatpush.bf16.msra.mxu0 %v155
  %198 = vmatpush.bf16.msra.mxu0 %v154
  %199 = vmatpush.bf16.msra.mxu0 %v153
  %200 = vmatpush.bf16.msra.mxu0 %v152
  %201 = vmatpush.bf16.msra.mxu0 %v151
  %202 = vmatmul.bf16.gmra.mxu0 %v72
  %v203 = vpop.f32.mrf.mxu0
  %v204 = vadd.f32 %v185, %v203
  %v205 = vpop.f32.mrf.mxu0
  %v206 = vadd.f32 %v187, %v205
  %207 = vmatmul.bf16.gmra.mxu0 %v74
  %v208 = vpop.f32.mrf.mxu0
  %v209 = vadd.f32 %v190, %v208
  %v210 = vpop.f32.mrf.mxu0
  %v211 = vadd.f32 %v192, %v210
  %212 = vdwg.mxu0
  %v213 = vld [vmem:[%s1] sm:$0xff]
  %v214 = vld [vmem:[%s1 + $0x8] sm:$0xff]
  %v215 = vld [vmem:[%s1 + $0x10] sm:$0xff]
  %v216 = vld [vmem:[%s1 + $0x18] sm:$0xff]
  %v221 = vunpack.c.l.b16 %v213
  %v222 = vunpack.c.h.b16 %v213
  %v223 = vunpack.c.l.b16 %v214
  %v224 = vunpack.c.h.b16 %v214
  %v225 = vunpack.c.l.b16 %v215
  %v226 = vunpack.c.h.b16 %v215
  %v227 = vunpack.c.l.b16 %v216
  %v228 = vunpack.c.h.b16 %v216
  %v229 = vpack.c.b16 %v223, %v221
  %v230 = vpack.c.b16 %v224, %v222
  %v231 = vpack.c.b16 %v227, %v225
  %v232 = vpack.c.b16 %v228, %v226
  %237 = vmatpush.bf16.msra.mxu0 %v150
  %238 = vmatpush.bf16.msra.mxu0 %v149
  %239 = vmatpush.bf16.msra.mxu0 %v148
  %240 = vmatpush.bf16.msra.mxu0 %v147
  %241 = vmatpush.bf16.msra.mxu0 %v146
  %242 = vmatpush.bf16.msra.mxu0 %v145
  %243 = vmatpush.bf16.msra.mxu0 %v144
  %244 = vmatpush.bf16.msra.mxu0 %v143
  %245 = vmatmul.bf16.gmra.mxu0 %v229
  %v246 = vpop.f32.mrf.mxu0
  %v247 = vadd.f32 0.0, %v246
  %v248 = vpop.f32.mrf.mxu0
  %v249 = vadd.f32 0.0, %v248
  %250 = vmatmul.bf16.gmra.mxu0 %v231
  %v251 = vpop.f32.mrf.mxu0
  %v252 = vadd.f32 0.0, %v251
  %v253 = vpop.f32.mrf.mxu0
  %v254 = vadd.f32 0.0, %v253
  %255 = vdwg.mxu0
  %256 = vmatpush.bf16.msra.mxu0 %v158
  %257 = vmatpush.bf16.msra.mxu0 %v157
  %258 = vmatpush.bf16.msra.mxu0 %v156
  %259 = vmatpush.bf16.msra.mxu0 %v155
  %260 = vmatpush.bf16.msra.mxu0 %v154
  %261 = vmatpush.bf16.msra.mxu0 %v153
  %262 = vmatpush.bf16.msra.mxu0 %v152
  %263 = vmatpush.bf16.msra.mxu0 %v151
  %264 = vmatmul.bf16.gmra.mxu0 %v230
  %v265 = vpop.f32.mrf.mxu0
  %v266 = vadd.f32 %v247, %v265
  %v267 = vpop.f32.mrf.mxu0
  %v268 = vadd.f32 %v249, %v267
  %269 = vmatmul.bf16.gmra.mxu0 %v232
  %v270 = vpop.f32.mrf.mxu0
  %v271 = vadd.f32 %v252, %v270
  %v272 = vpop.f32.mrf.mxu0
  %v273 = vadd.f32 %v254, %v272
  %274 = vdwg.mxu0
  %v275 = vmax.f32 %v204, %v266
  %v276 = vmax.f32 %v206, %v268
  %v277 = vmax.f32 %v209, %v271
  %v278 = vmax.f32 %v211, %v273
  %v279 = vld [vmem:[%s2] sm:$0xff]
  %v280 = vld [vmem:[%s2 + $0x8] sm:$0xff]
  %v281 = vld [vmem:[%s2 + $0x10] sm:$0xff]
  %v282 = vld [vmem:[%s2 + $0x18] sm:$0xff]
  %v287 = vunpack.c.l.b16 %v279
  %v288 = vunpack.c.h.b16 %v279
  %v289 = vunpack.c.l.b16 %v280
  %v290 = vunpack.c.h.b16 %v280
  %v291 = vunpack.c.l.b16 %v281
  %v292 = vunpack.c.h.b16 %v281
  %v293 = vunpack.c.l.b16 %v282
  %v294 = vunpack.c.h.b16 %v282
  %v295 = vpack.c.b16 %v289, %v287
  %v296 = vpack.c.b16 %v290, %v288
  %v297 = vpack.c.b16 %v293, %v291
  %v298 = vpack.c.b16 %v294, %v292
  %303 = vmatpush.bf16.msra.mxu0 %v150
  %304 = vmatpush.bf16.msra.mxu0 %v149
  %305 = vmatpush.bf16.msra.mxu0 %v148
  %306 = vmatpush.bf16.msra.mxu0 %v147
  %307 = vmatpush.bf16.msra.mxu0 %v146
  %308 = vmatpush.bf16.msra.mxu0 %v145
  %309 = vmatpush.bf16.msra.mxu0 %v144
  %310 = vmatpush.bf16.msra.mxu0 %v143
  %311 = vmatmul.bf16.gmra.mxu0 %v295
  %v312 = vpop.f32.mrf.mxu0
  %v313 = vadd.f32 0.0, %v312
  %v314 = vpop.f32.mrf.mxu0
  %v315 = vadd.f32 0.0, %v314
  %316 = vmatmul.bf16.gmra.mxu0 %v297
  %v317 = vpop.f32.mrf.mxu0
  %v318 = vadd.f32 0.0, %v317
  %v319 = vpop.f32.mrf.mxu0
  %v320 = vadd.f32 0.0, %v319
  %321 = vdwg.mxu0
  %322 = vmatpush.bf16.msra.mxu0 %v158
  %323 = vmatpush.bf16.msra.mxu0 %v157
  %324 = vmatpush.bf16.msra.mxu0 %v156
  %325 = vmatpush.bf16.msra.mxu0 %v155
  %326 = vmatpush.bf16.msra.mxu0 %v154
  %327 = vmatpush.bf16.msra.mxu0 %v153
  %328 = vmatpush.bf16.msra.mxu0 %v152
  %329 = vmatpush.bf16.msra.mxu0 %v151
  %330 = vmatmul.bf16.gmra.mxu0 %v296
  %v331 = vpop.f32.mrf.mxu0
  %v332 = vadd.f32 %v313, %v331
  %v333 = vpop.f32.mrf.mxu0
  %v334 = vadd.f32 %v315, %v333
  %335 = vmatmul.bf16.gmra.mxu0 %v298
  %v336 = vpop.f32.mrf.mxu0
  %v337 = vadd.f32 %v318, %v336
  %v338 = vpop.f32.mrf.mxu0
  %v339 = vadd.f32 %v320, %v338
  %340 = vdwg.mxu0
  %v341 = vmax.f32 %v275, %v332
  %v342 = vmax.f32 %v276, %v334
  %v343 = vmax.f32 %v277, %v337
  %v344 = vmax.f32 %v278, %v339
  %v345 = vld [vmem:[%s3] sm:$0xff]
  %v346 = vld [vmem:[%s3 + $0x8] sm:$0xff]
  %v347 = vld [vmem:[%s3 + $0x10] sm:$0xff]
  %v348 = vld [vmem:[%s3 + $0x18] sm:$0xff]
  %v353 = vunpack.c.l.b16 %v345
  %v354 = vunpack.c.h.b16 %v345
  %v355 = vunpack.c.l.b16 %v346
  %v356 = vunpack.c.h.b16 %v346
  %v357 = vunpack.c.l.b16 %v347
  %v358 = vunpack.c.h.b16 %v347
  %v359 = vunpack.c.l.b16 %v348
  %v360 = vunpack.c.h.b16 %v348
  %v361 = vpack.c.b16 %v355, %v353
  %v362 = vpack.c.b16 %v356, %v354
  %v363 = vpack.c.b16 %v359, %v357
  %v364 = vpack.c.b16 %v360, %v358
  %369 = vmatpush.bf16.msra.mxu0 %v150
  %370 = vmatpush.bf16.msra.mxu0 %v149
  %371 = vmatpush.bf16.msra.mxu0 %v148
  %372 = vmatpush.bf16.msra.mxu0 %v147
  %373 = vmatpush.bf16.msra.mxu0 %v146
  %374 = vmatpush.bf16.msra.mxu0 %v145
  %375 = vmatpush.bf16.msra.mxu0 %v144
  %376 = vmatpush.bf16.msra.mxu0 %v143
  %377 = vmatmul.bf16.gmra.mxu0 %v361
  %v378 = vpop.f32.mrf.mxu0
  %v379 = vadd.f32 0.0, %v378
  %v380 = vpop.f32.mrf.mxu0
  %v381 = vadd.f32 0.0, %v380
  %382 = vmatmul.bf16.gmra.mxu0 %v363
  %v383 = vpop.f32.mrf.mxu0
  %v384 = vadd.f32 0.0, %v383
  %v385 = vpop.f32.mrf.mxu0
  %v386 = vadd.f32 0.0, %v385
  %387 = vdwg.mxu0
  %388 = vmatpush.bf16.msra.mxu0 %v158
  %389 = vmatpush.bf16.msra.mxu0 %v157
  %390 = vmatpush.bf16.msra.mxu0 %v156
  %391 = vmatpush.bf16.msra.mxu0 %v155
  %392 = vmatpush.bf16.msra.mxu0 %v154
  %393 = vmatpush.bf16.msra.mxu0 %v153
  %394 = vmatpush.bf16.msra.mxu0 %v152
  %395 = vmatpush.bf16.msra.mxu0 %v151
  %396 = vmatmul.bf16.gmra.mxu0 %v362
  %v397 = vpop.f32.mrf.mxu0
  %v398 = vadd.f32 %v379, %v397
  %v399 = vpop.f32.mrf.mxu0
  %v400 = vadd.f32 %v381, %v399
  %401 = vmatmul.bf16.gmra.mxu0 %v364
  %v402 = vpop.f32.mrf.mxu0
  %v403 = vadd.f32 %v384, %v402
  %v404 = vpop.f32.mrf.mxu0
  %v405 = vadd.f32 %v386, %v404
  %406 = vdwg.mxu0
  %v407 = vmax.f32 %v341, %v398
  %v408 = vmax.f32 %v342, %v400
  %v409 = vmax.f32 %v343, %v403
  %v410 = vmax.f32 %v344, %v405
  %v411 = vld [vmem:[%s5] sm:$0x1]
  %v413 = vperm.slane %v411, 0
  %v415 = vadd.f32 %v407, %v413
  %v416 = vadd.f32 %v408, %v413
  %v417 = vadd.f32 %v409, %v413
  %v418 = vadd.f32 %v410, %v413
  %v419 = vmax.f32 %v415, 0.0
  %v420 = vmax.f32 %v416, 0.0
  %v421 = vmax.f32 %v417, 0.0
  %v422 = vmax.f32 %v418, 0.0
  %vm423 = vcmask 130048
  %424 = vst.msk [vmem:[%s6] sm:$0xff] %vm423, %v419
  %425 = vst.msk [vmem:[%s6 + $0x8] sm:$0xff] %vm423, %v420
  %426 = vst.msk [vmem:[%s6 + $0x10] sm:$0xff] %vm423, %v421
  %427 = vst.msk [vmem:[%s6 + $0x18] sm:$0xff] %vm423, %v422
  // Predicated region
  $region26: #{convnet_forward.4} parent=0 // pred_check
    _
  $region27: #{convnet_forward.4} parent=0 // pred_check_branch
    %429 = sbr.rel (0) target = $region29
  $region28: #{convnet_forward.4} parent=0 // pred_region
    _
  $region29: #{convnet_forward.4} parent=0 // pred_fallthru
    _
  // Predicated region
  $region30: #{convnet_forward.4} parent=0 // pred_check
    _
  $region31: #{convnet_forward.4} parent=0 // pred_check_branch
    %431 = sbr.rel (0) target = $region33
  $region32: #{convnet_forward.4} parent=0 // pred_region
    _
  $region33: #{convnet_forward.4} parent=0 // pred_fallthru
    _

</llo_original>
